<compile_context>
chip_gen: v6e
topology: v6e:2x2x1
jax: 0.10.0
libtpu: 0.0.40
codegen_flags: <defaults>
</compile_context>

<pallas_src>
import math
import jax
import jax.numpy as jnp
from jax.experimental import pallas as pl
from jax.experimental.pallas import tpu as pltpu


NEG_SLOPE = 0.01  # nn.LeakyReLU() default


def _leaky(v):
    # identical to leaky_relu for 0 < slope < 1, one fewer VALU op than where().
    return jnp.maximum(v, NEG_SLOPE * v)


def _round_up(n, m):
    return ((n + m - 1) // m) * m


# ---------------------------------------------------------------------------
# Kernel 1: 9-layer trunk, grid over batch tiles only.
# ---------------------------------------------------------------------------
def trunk_kernel(x_ref,
                 w1t_ref, b1_ref,
                 w2t_ref, b2_ref,
                 w3t_ref, b3_ref,
                 w4at_ref, w4bt_ref, b4_ref,
                 w5t_ref, b5_ref,
                 w6at_ref, w6bt_ref, b6_ref,
                 w7t_ref, b7_ref,
                 w8t_ref, b8_ref,
                 w9t_ref, b9_ref,
                 trunk_ref):
    x = x_ref[...]                              # (TB, noise_dim)
    x1 = x[:, 0:1]
    x2 = x[:, 1:2]
    x3 = x[:, 2:3]

    # f1: Linear(1, h) -> broadcast outer product (VPU)
    w = x1 * w1t_ref[...] + b1_ref[...]
    # f2: Linear(h, h) + act
    w = _leaky(jnp.dot(w, w2t_ref[...], preferred_element_type=jnp.float32)
               + b2_ref[...])
    # f3: Linear(1, h) on x2
    wa = x2 * w3t_ref[...] + b3_ref[...]
    # f4: Linear(2h, h) on cat([w, wa]) + act   (concat folded into split matmuls)
    w = _leaky(jnp.dot(w, w4at_ref[...], preferred_element_type=jnp.float32)
               + jnp.dot(wa, w4bt_ref[...], preferred_element_type=jnp.float32)
               + b4_ref[...])
    # f5: Linear(1, h) on x3
    wb = x3 * w5t_ref[...] + b5_ref[...]
    # f6: Linear(2h, h) on cat([w, wb]) + act
    w = _leaky(jnp.dot(w, w6at_ref[...], preferred_element_type=jnp.float32)
               + jnp.dot(wb, w6bt_ref[...], preferred_element_type=jnp.float32)
               + b6_ref[...])
    # f7, f8, f9: Linear(h, h) + act
    w = _leaky(jnp.dot(w, w7t_ref[...], preferred_element_type=jnp.float32)
               + b7_ref[...])
    w = _leaky(jnp.dot(w, w8t_ref[...], preferred_element_type=jnp.float32)
               + b8_ref[...])
    w = _leaky(jnp.dot(w, w9t_ref[...], preferred_element_type=jnp.float32)
               + b9_ref[...])
    trunk_ref[...] = w


# ---------------------------------------------------------------------------
# Kernel 2: streamed output projection.  Grid = (P tiles outer, batch inner)
# so Wout^T's block index only changes on the OUTER axis -> Wout^T is DMA'd
# from HBM exactly once in total.
# ---------------------------------------------------------------------------
def proj_kernel(trunk_ref, woutt_ref, bout_ref, o_ref):
    t = trunk_ref[...].astype(woutt_ref.dtype)   # bf16 MXU pass when Wout is bf16
    o_ref[...] = (jnp.dot(t, woutt_ref[...], preferred_element_type=jnp.float32)
                  + bout_ref[...]).astype(o_ref.dtype)


def hypernet_weight_forward(x, params, out_shape_tuple, *,
                            max_tn=2048, max_tb=256,
                            wout_dtype=jnp.bfloat16,
                            out_dtype=jnp.float32):
    """x: (B, noise_dim) float32.  Returns (B, *out_shape_tuple) out_dtype."""
    (w1t, b1, w2t, b2, w3t, b3, w4at, w4bt, b4, w5t, b5,
     w6at, w6bt, b6, w7t, b7, w8t, b8, w9t, b9, woutt, bout) = params

    B, noise_dim = x.shape
    h = w2t.shape[0]
    P = int(math.prod(out_shape_tuple))

    # Output (lane) dim: pick TN first (<= max_tn, multiple of 128), then pad
    # P up to a multiple of TN.  Extra padding is at most TN*h*4 bytes of Wout.
    max_tn = max(128, (max_tn // 128) * 128)
    p128 = _round_up(P, 128)
    tn = min(max_tn, p128)
    P_pad = _round_up(p128, tn)

    # Batch (sublane) dim: pad to a multiple of 8, tile up to max_tb rows.
    max_tb = max(8, (max_tb // 8) * 8)
    tb = min(max_tb, _round_up(B, 8))
    B_pad = _round_up(B, tb)

    # Zero-pad so every tile is dense; padding is sliced off below.
    if P_pad != P:
        woutt = jnp.pad(woutt, ((0, 0), (0, P_pad - P)))
        bout = jnp.pad(bout, ((0, 0), (0, P_pad - P)))
    if B_pad != B:
        x = jnp.pad(x, ((0, B_pad - B), (0, 0)))
    woutt = woutt.astype(wout_dtype)   # bf16 by default: halves the HBM stream

    trunk_params = (w1t, b1, w2t, b2, w3t, b3, w4at, w4bt, b4, w5t, b5,
                    w6at, w6bt, b6, w7t, b7, w8t, b8, w9t, b9)

    # ---- Kernel 1: trunk (B_pad, h), batch-tiled, weights VMEM-resident ----
    trunk = pl.pallas_call(
        trunk_kernel,
        out_shape=jax.ShapeDtypeStruct((B_pad, h), jnp.float32),
        grid_spec=pltpu.PrefetchScalarGridSpec(
            num_scalar_prefetch=0,
            grid=(B_pad // tb,),
            in_specs=([pl.BlockSpec((tb, noise_dim), lambda i: (i, 0))]
                      + [pl.BlockSpec(p.shape, lambda i: (0, 0))
                         for p in trunk_params]),
            out_specs=pl.BlockSpec((tb, h), lambda i: (i, 0))),
        compiler_params=pltpu.CompilerParams(
            dimension_semantics=("parallel",)),
    )(x, *trunk_params)

    # ---- Kernel 2: streamed projection -------------------------------------
    itemsize = lambda dt: jnp.dtype(dt).itemsize
    est_vmem = (2 * h * tn * itemsize(wout_dtype)        # Wout^T double-buffered
                + 2 * tb * tn * itemsize(out_dtype)      # output double-buffered
                + 2 * tb * h * 4                         # trunk tiles
                + 2 * tn * 4)                            # bout
    vmem_limit = None
    if est_vmem > 12 * 1024 * 1024:                      # only raise when needed
        vmem_limit = min(int(est_vmem * 2), 96 * 1024 * 1024)

    out = pl.pallas_call(
        proj_kernel,
        out_shape=jax.ShapeDtypeStruct((B_pad, P_pad), out_dtype),
        grid_spec=pltpu.PrefetchScalarGridSpec(
            num_scalar_prefetch=0,
            grid=(P_pad // tn, B_pad // tb),             # P outer, batch inner
            in_specs=[pl.BlockSpec((tb, h), lambda i, j: (j, 0)),   # trunk (tiny)
                      pl.BlockSpec((h, tn), lambda i, j: (0, i)),   # Wout^T stream
                      pl.BlockSpec((1, tn), lambda i, j: (0, i))],  # bout stream
            out_specs=pl.BlockSpec((tb, tn), lambda i, j: (j, i))),
        compiler_params=pltpu.CompilerParams(
            # Trunk is precomputed -> no cross-iteration state; both axes are
            # independent, so both may be megacore-split (fixes idle 2nd TC on
            # v7x when the batch fits a single tile).
            dimension_semantics=("parallel", "parallel"),
            vmem_limit_bytes=vmem_limit),
    )(trunk, woutt, bout)

    out = out[:B, :P]
    return out.reshape((B, *out_shape_tuple))


# ---------------------------------------------------------------------------
# Deterministic parameter construction (synthetic; mirrors __init__ shapes).
# ---------------------------------------------------------------------------
def _xavier_uniform(key, fan_out, fan_in):
    limit = math.sqrt(6.0 / (fan_in + fan_out))
    return jax.random.uniform(key, (fan_out, fan_in), jnp.float32, -limit, limit)


def make_params(key, shape, is_hyper_w=True, h_units=128, noise_shape=1):
    P = int(math.prod(shape))
    keys = jax.random.split(key, 12)

    W1 = _xavier_uniform(keys[0], h_units, 1)
    W2 = _xavier_uniform(keys[1], h_units, h_units)
    W3 = _xavier_uniform(keys[2], h_units, 1)
    W4 = _xavier_uniform(keys[3], h_units, 2 * h_units)
    W5 = _xavier_uniform(keys[4], h_units, 1)
    W6 = _xavier_uniform(keys[5], h_units, 2 * h_units)
    W7 = _xavier_uniform(keys[6], h_units, h_units)
    W8 = _xavier_uniform(keys[7], h_units, h_units)
    W9 = _xavier_uniform(keys[8], h_units, h_units)

    # TODO(synk): hyperfan_in_W_init / hyperfan_in_b_init are not defined in the
    # source excerpt; use a deterministic hyperfan-in-style uniform bound instead.
    noise_var = (2 + 2) ** 2 / 12.0
    relu_gain = 2.0
    fan_in = h_units
    if is_hyper_w:
        var = relu_gain / (noise_var * noise_shape * fan_in)
    else:
        var = relu_gain / (noise_var * fan_in)
    bound = math.sqrt(3.0 * var)
    Wout = jax.random.uniform(keys[9], (P, h_units), jnp.float32, -bound, bound)

    z_h = jnp.zeros((1, h_units), jnp.float32)
    z_p = jnp.zeros((1, P), jnp.float32)

    # Pre-transpose weights; split f4/f6 along the input (column) dimension so
    # cat([a,b]) @ W^T == a @ W[:, :h]^T + b @ W[:, h:]^T.
    params = (
        W1.T, z_h,                                   # f1
        W2.T, z_h,                                   # f2
        W3.T, z_h,                                   # f3
        W4[:, :h_units].T, W4[:, h_units:].T, z_h,   # f4 split
        W5.T, z_h,                                   # f5
        W6[:, :h_units].T, W6[:, h_units:].T, z_h,   # f6 split
        W7.T, z_h,                                   # f7
        W8.T, z_h,                                   # f8
        W9.T, z_h,                                   # f9
        Wout.T, z_p,                                 # out
    )
    return params


def reference_forward(x, params, shape):
    (w1t, b1, w2t, b2, w3t, b3, w4at, w4bt, b4, w5t, b5,
     w6at, w6bt, b6, w7t, b7, w8t, b8, w9t, b9, woutt, bout) = params
    x1, x2, x3 = x[:, 0:1], x[:, 1:2], x[:, 2:3]
    w = x1 * w1t + b1
    w = _leaky(w @ w2t + b2)
    wa = x2 * w3t + b3
    w = _leaky(w @ w4at + wa @ w4bt + b4)
    wb = x3 * w5t + b5
    w = _leaky(w @ w6at + wb @ w6bt + b6)
    w = _leaky(w @ w7t + b7)
    w = _leaky(w @ w8t + b8)
    w = _leaky(w @ w9t + b9)
    w = w @ woutt + bout
    return w.reshape((x.shape[0], *shape))


if __name__ == "__main__":
    key = jax.random.PRNGKey(0)
    k_x, k_p = jax.random.split(key)

    B = 20                 # exercises batch padding (pads to 24)
    noise_dim = 3          # forward slices x[:, 0:3]
    h_units = 128
    out_shape = (16, 24)   # P = 384 -> TN = 384 (single lane-dense output tile)

    x = jax.random.uniform(k_x, (B, noise_dim), jnp.float32, -2.0, 2.0)
    params = make_params(k_p, out_shape, is_hyper_w=True, h_units=h_units)

    y_ref = reference_forward(x, params, out_shape)

    # 1) f32 Wout stream: faithful module numerics, tight tolerance.
    y_f32 = hypernet_weight_forward(x, params, out_shape, wout_dtype=jnp.float32)
    y_f32 = jax.block_until_ready(y_f32)
    assert y_f32.shape == (B, *out_shape), y_f32.shape
    assert jnp.allclose(y_f32, y_ref, atol=1e-4, rtol=1e-4), "f32 mismatch vs reference"

    # 2) default perf config (bf16 Wout stream, f32 accumulation): loose tolerance.
    y_bf16 = hypernet_weight_forward(x, params, out_shape)
    y_bf16 = jax.block_until_ready(y_bf16)
    assert y_bf16.shape == (B, *out_shape), y_bf16.shape
    assert jnp.allclose(y_bf16, y_ref, atol=3e-2, rtol=3e-2), "bf16 mismatch vs reference"

    print("KERNEL_OK")
</pallas_src>

<mosaic_0001>
module attributes {stable_mosaic.version = 11 : i64} {
  func.func @trunk_kernel(%arg0: i32, %arg1: memref<24x3xf32, #tpu.memory_space<vmem>>, %arg2: memref<1x128xf32, #tpu.memory_space<vmem>>, %arg3: memref<1x128xf32, #tpu.memory_space<vmem>>, %arg4: memref<128x128xf32, #tpu.memory_space<vmem>>, %arg5: memref<1x128xf32, #tpu.memory_space<vmem>>, %arg6: memref<1x128xf32, #tpu.memory_space<vmem>>, %arg7: memref<1x128xf32, #tpu.memory_space<vmem>>, %arg8: memref<128x128xf32, #tpu.memory_space<vmem>>, %arg9: memref<128x128xf32, #tpu.memory_space<vmem>>, %arg10: memref<1x128xf32, #tpu.memory_space<vmem>>, %arg11: memref<1x128xf32, #tpu.memory_space<vmem>>, %arg12: memref<1x128xf32, #tpu.memory_space<vmem>>, %arg13: memref<128x128xf32, #tpu.memory_space<vmem>>, %arg14: memref<128x128xf32, #tpu.memory_space<vmem>>, %arg15: memref<1x128xf32, #tpu.memory_space<vmem>>, %arg16: memref<128x128xf32, #tpu.memory_space<vmem>>, %arg17: memref<1x128xf32, #tpu.memory_space<vmem>>, %arg18: memref<128x128xf32, #tpu.memory_space<vmem>>, %arg19: memref<1x128xf32, #tpu.memory_space<vmem>>, %arg20: memref<128x128xf32, #tpu.memory_space<vmem>>, %arg21: memref<1x128xf32, #tpu.memory_space<vmem>>, %arg22: memref<24x128xf32, #tpu.memory_space<vmem>>) attributes {dimension_semantics = [#tpu.dimension_semantics<parallel>], iteration_bounds = array<i64: 1>, scalar_prefetch = 0 : i64, scratch_operands = 0 : i64, tpu.core_type = #tpu.core_type<tc>, window_params = [{transform_indices = @transform_0, window_bounds = array<i64: 24, 3>}, {pipeline_mode = #tpu.pipeline_mode<synchronous>, transform_indices = @transform_1, window_bounds = array<i64: 1, 128>}, {pipeline_mode = #tpu.pipeline_mode<synchronous>, transform_indices = @transform_2, window_bounds = array<i64: 1, 128>}, {pipeline_mode = #tpu.pipeline_mode<synchronous>, transform_indices = @transform_3, window_bounds = array<i64: 128, 128>}, {pipeline_mode = #tpu.pipeline_mode<synchronous>, transform_indices = @transform_4, window_bounds = array<i64: 1, 128>}, {pipeline_mode = #tpu.pipeline_mode<synchronous>, transform_indices = @transform_5, window_bounds = array<i64: 1, 128>}, {pipeline_mode = #tpu.pipeline_mode<synchronous>, transform_indices = @transform_6, window_bounds = array<i64: 1, 128>}, {pipeline_mode = #tpu.pipeline_mode<synchronous>, transform_indices = @transform_7, window_bounds = array<i64: 128, 128>}, {pipeline_mode = #tpu.pipeline_mode<synchronous>, transform_indices = @transform_8, window_bounds = array<i64: 128, 128>}, {pipeline_mode = #tpu.pipeline_mode<synchronous>, transform_indices = @transform_9, window_bounds = array<i64: 1, 128>}, {pipeline_mode = #tpu.pipeline_mode<synchronous>, transform_indices = @transform_10, window_bounds = array<i64: 1, 128>}, {pipeline_mode = #tpu.pipeline_mode<synchronous>, transform_indices = @transform_11, window_bounds = array<i64: 1, 128>}, {pipeline_mode = #tpu.pipeline_mode<synchronous>, transform_indices = @transform_12, window_bounds = array<i64: 128, 128>}, {pipeline_mode = #tpu.pipeline_mode<synchronous>, transform_indices = @transform_13, window_bounds = array<i64: 128, 128>}, {pipeline_mode = #tpu.pipeline_mode<synchronous>, transform_indices = @transform_14, window_bounds = array<i64: 1, 128>}, {pipeline_mode = #tpu.pipeline_mode<synchronous>, transform_indices = @transform_15, window_bounds = array<i64: 128, 128>}, {pipeline_mode = #tpu.pipeline_mode<synchronous>, transform_indices = @transform_16, window_bounds = array<i64: 1, 128>}, {pipeline_mode = #tpu.pipeline_mode<synchronous>, transform_indices = @transform_17, window_bounds = array<i64: 128, 128>}, {pipeline_mode = #tpu.pipeline_mode<synchronous>, transform_indices = @transform_18, window_bounds = array<i64: 1, 128>}, {pipeline_mode = #tpu.pipeline_mode<synchronous>, transform_indices = @transform_19, window_bounds = array<i64: 128, 128>}, {pipeline_mode = #tpu.pipeline_mode<synchronous>, transform_indices = @transform_20, window_bounds = array<i64: 1, 128>}, {transform_indices = @transform_21, window_bounds = array<i64: 24, 128>}]} {
    %c0 = arith.constant 0 : index
    %c0_0 = arith.constant 0 : index
    %0 = vector.load %arg1[%c0, %c0_0] : memref<24x3xf32, #tpu.memory_space<vmem>>, vector<24x3xf32>
    %1 = vector.extract_strided_slice %0 {offsets = [0, 0], sizes = [24, 1], strides = [1, 1]} : vector<24x3xf32> to vector<24x1xf32>
    %2 = vector.extract_strided_slice %0 {offsets = [0, 1], sizes = [24, 1], strides = [1, 1]} : vector<24x3xf32> to vector<24x1xf32>
    %3 = vector.extract_strided_slice %0 {offsets = [0, 2], sizes = [24, 1], strides = [1, 1]} : vector<24x3xf32> to vector<24x1xf32>
    %c0_1 = arith.constant 0 : index
    %c0_2 = arith.constant 0 : index
    %4 = vector.load %arg2[%c0_1, %c0_2] : memref<1x128xf32, #tpu.memory_space<vmem>>, vector<1x128xf32>
    %5 = vector.broadcast %1 : vector<24x1xf32> to vector<24x128xf32>
    %6 = vector.broadcast %4 : vector<1x128xf32> to vector<24x128xf32>
    %7 = arith.mulf %5, %6 : vector<24x128xf32>
    %c0_3 = arith.constant 0 : index
    %c0_4 = arith.constant 0 : index
    %8 = vector.load %arg3[%c0_3, %c0_4] : memref<1x128xf32, #tpu.memory_space<vmem>>, vector<1x128xf32>
    %9 = vector.broadcast %8 : vector<1x128xf32> to vector<24x128xf32>
    %10 = arith.addf %7, %9 : vector<24x128xf32>
    %c0_5 = arith.constant 0 : index
    %c0_6 = arith.constant 0 : index
    %11 = vector.load %arg4[%c0_5, %c0_6] : memref<128x128xf32, #tpu.memory_space<vmem>>, vector<128x128xf32>
    %cst = arith.constant dense<0.000000e+00> : vector<24x128xf32>
    %12 = tpu.matmul %10, %11, %cst {dimension_numbers = #tpu.dot_dimension_numbers<[1], [0], [0], [1], [0, 0, 1, 1], [], []>} : vector<24x128xf32>, vector<128x128xf32>, vector<24x128xf32> -> vector<24x128xf32>
    %c0_7 = arith.constant 0 : index
    %c0_8 = arith.constant 0 : index
    %13 = vector.load %arg5[%c0_7, %c0_8] : memref<1x128xf32, #tpu.memory_space<vmem>>, vector<1x128xf32>
    %14 = vector.broadcast %13 : vector<1x128xf32> to vector<24x128xf32>
    %15 = arith.addf %12, %14 : vector<24x128xf32>
    %cst_9 = arith.constant 0.00999999977 : f32
    %16 = vector.broadcast %cst_9 : f32 to vector<24x128xf32>
    %17 = arith.mulf %16, %15 : vector<24x128xf32>
    %18 = arith.maximumf %15, %17 : vector<24x128xf32>
    %c0_10 = arith.constant 0 : index
    %c0_11 = arith.constant 0 : index
    %19 = vector.load %arg6[%c0_10, %c0_11] : memref<1x128xf32, #tpu.memory_space<vmem>>, vector<1x128xf32>
    %20 = vector.broadcast %2 : vector<24x1xf32> to vector<24x128xf32>
    %21 = vector.broadcast %19 : vector<1x128xf32> to vector<24x128xf32>
    %22 = arith.mulf %20, %21 : vector<24x128xf32>
    %c0_12 = arith.constant 0 : index
    %c0_13 = arith.constant 0 : index
    %23 = vector.load %arg7[%c0_12, %c0_13] : memref<1x128xf32, #tpu.memory_space<vmem>>, vector<1x128xf32>
    %24 = vector.broadcast %23 : vector<1x128xf32> to vector<24x128xf32>
    %25 = arith.addf %22, %24 : vector<24x128xf32>
    %c0_14 = arith.constant 0 : index
    %c0_15 = arith.constant 0 : index
    %26 = vector.load %arg8[%c0_14, %c0_15] : memref<128x128xf32, #tpu.memory_space<vmem>>, vector<128x128xf32>
    %cst_16 = arith.constant dense<0.000000e+00> : vector<24x128xf32>
    %27 = tpu.matmul %18, %26, %cst_16 {dimension_numbers = #tpu.dot_dimension_numbers<[1], [0], [0], [1], [0, 0, 1, 1], [], []>} : vector<24x128xf32>, vector<128x128xf32>, vector<24x128xf32> -> vector<24x128xf32>
    %c0_17 = arith.constant 0 : index
    %c0_18 = arith.constant 0 : index
    %28 = vector.load %arg9[%c0_17, %c0_18] : memref<128x128xf32, #tpu.memory_space<vmem>>, vector<128x128xf32>
    %cst_19 = arith.constant dense<0.000000e+00> : vector<24x128xf32>
    %29 = tpu.matmul %25, %28, %cst_19 {dimension_numbers = #tpu.dot_dimension_numbers<[1], [0], [0], [1], [0, 0, 1, 1], [], []>} : vector<24x128xf32>, vector<128x128xf32>, vector<24x128xf32> -> vector<24x128xf32>
    %30 = arith.addf %27, %29 : vector<24x128xf32>
    %c0_20 = arith.constant 0 : index
    %c0_21 = arith.constant 0 : index
    %31 = vector.load %arg10[%c0_20, %c0_21] : memref<1x128xf32, #tpu.memory_space<vmem>>, vector<1x128xf32>
    %32 = vector.broadcast %31 : vector<1x128xf32> to vector<24x128xf32>
    %33 = arith.addf %30, %32 : vector<24x128xf32>
    %cst_22 = arith.constant 0.00999999977 : f32
    %34 = vector.broadcast %cst_22 : f32 to vector<24x128xf32>
    %35 = arith.mulf %34, %33 : vector<24x128xf32>
    %36 = arith.maximumf %33, %35 : vector<24x128xf32>
    %c0_23 = arith.constant 0 : index
    %c0_24 = arith.constant 0 : index
    %37 = vector.load %arg11[%c0_23, %c0_24] : memref<1x128xf32, #tpu.memory_space<vmem>>, vector<1x128xf32>
    %38 = vector.broadcast %3 : vector<24x1xf32> to vector<24x128xf32>
    %39 = vector.broadcast %37 : vector<1x128xf32> to vector<24x128xf32>
    %40 = arith.mulf %38, %39 : vector<24x128xf32>
    %c0_25 = arith.constant 0 : index
    %c0_26 = arith.constant 0 : index
    %41 = vector.load %arg12[%c0_25, %c0_26] : memref<1x128xf32, #tpu.memory_space<vmem>>, vector<1x128xf32>
    %42 = vector.broadcast %41 : vector<1x128xf32> to vector<24x128xf32>
    %43 = arith.addf %40, %42 : vector<24x128xf32>
    %c0_27 = arith.constant 0 : index
    %c0_28 = arith.constant 0 : index
    %44 = vector.load %arg13[%c0_27, %c0_28] : memref<128x128xf32, #tpu.memory_space<vmem>>, vector<128x128xf32>
    %cst_29 = arith.constant dense<0.000000e+00> : vector<24x128xf32>
    %45 = tpu.matmul %36, %44, %cst_29 {dimension_numbers = #tpu.dot_dimension_numbers<[1], [0], [0], [1], [0, 0, 1, 1], [], []>} : vector<24x128xf32>, vector<128x128xf32>, vector<24x128xf32> -> vector<24x128xf32>
    %c0_30 = arith.constant 0 : index
    %c0_31 = arith.constant 0 : index
    %46 = vector.load %arg14[%c0_30, %c0_31] : memref<128x128xf32, #tpu.memory_space<vmem>>, vector<128x128xf32>
    %cst_32 = arith.constant dense<0.000000e+00> : vector<24x128xf32>
    %47 = tpu.matmul %43, %46, %cst_32 {dimension_numbers = #tpu.dot_dimension_numbers<[1], [0], [0], [1], [0, 0, 1, 1], [], []>} : vector<24x128xf32>, vector<128x128xf32>, vector<24x128xf32> -> vector<24x128xf32>
    %48 = arith.addf %45, %47 : vector<24x128xf32>
    %c0_33 = arith.constant 0 : index
    %c0_34 = arith.constant 0 : index
    %49 = vector.load %arg15[%c0_33, %c0_34] : memref<1x128xf32, #tpu.memory_space<vmem>>, vector<1x128xf32>
    %50 = vector.broadcast %49 : vector<1x128xf32> to vector<24x128xf32>
    %51 = arith.addf %48, %50 : vector<24x128xf32>
    %cst_35 = arith.constant 0.00999999977 : f32
    %52 = vector.broadcast %cst_35 : f32 to vector<24x128xf32>
    %53 = arith.mulf %52, %51 : vector<24x128xf32>
    %54 = arith.maximumf %51, %53 : vector<24x128xf32>
    %c0_36 = arith.constant 0 : index
    %c0_37 = arith.constant 0 : index
    %55 = vector.load %arg16[%c0_36, %c0_37] : memref<128x128xf32, #tpu.memory_space<vmem>>, vector<128x128xf32>
    %cst_38 = arith.constant dense<0.000000e+00> : vector<24x128xf32>
    %56 = tpu.matmul %54, %55, %cst_38 {dimension_numbers = #tpu.dot_dimension_numbers<[1], [0], [0], [1], [0, 0, 1, 1], [], []>} : vector<24x128xf32>, vector<128x128xf32>, vector<24x128xf32> -> vector<24x128xf32>
    %c0_39 = arith.constant 0 : index
    %c0_40 = arith.constant 0 : index
    %57 = vector.load %arg17[%c0_39, %c0_40] : memref<1x128xf32, #tpu.memory_space<vmem>>, vector<1x128xf32>
    %58 = vector.broadcast %57 : vector<1x128xf32> to vector<24x128xf32>
    %59 = arith.addf %56, %58 : vector<24x128xf32>
    %cst_41 = arith.constant 0.00999999977 : f32
    %60 = vector.broadcast %cst_41 : f32 to vector<24x128xf32>
    %61 = arith.mulf %60, %59 : vector<24x128xf32>
    %62 = arith.maximumf %59, %61 : vector<24x128xf32>
    %c0_42 = arith.constant 0 : index
    %c0_43 = arith.constant 0 : index
    %63 = vector.load %arg18[%c0_42, %c0_43] : memref<128x128xf32, #tpu.memory_space<vmem>>, vector<128x128xf32>
    %cst_44 = arith.constant dense<0.000000e+00> : vector<24x128xf32>
    %64 = tpu.matmul %62, %63, %cst_44 {dimension_numbers = #tpu.dot_dimension_numbers<[1], [0], [0], [1], [0, 0, 1, 1], [], []>} : vector<24x128xf32>, vector<128x128xf32>, vector<24x128xf32> -> vector<24x128xf32>
    %c0_45 = arith.constant 0 : index
    %c0_46 = arith.constant 0 : index
    %65 = vector.load %arg19[%c0_45, %c0_46] : memref<1x128xf32, #tpu.memory_space<vmem>>, vector<1x128xf32>
    %66 = vector.broadcast %65 : vector<1x128xf32> to vector<24x128xf32>
    %67 = arith.addf %64, %66 : vector<24x128xf32>
    %cst_47 = arith.constant 0.00999999977 : f32
    %68 = vector.broadcast %cst_47 : f32 to vector<24x128xf32>
    %69 = arith.mulf %68, %67 : vector<24x128xf32>
    %70 = arith.maximumf %67, %69 : vector<24x128xf32>
    %c0_48 = arith.constant 0 : index
    %c0_49 = arith.constant 0 : index
    %71 = vector.load %arg20[%c0_48, %c0_49] : memref<128x128xf32, #tpu.memory_space<vmem>>, vector<128x128xf32>
    %cst_50 = arith.constant dense<0.000000e+00> : vector<24x128xf32>
    %72 = tpu.matmul %70, %71, %cst_50 {dimension_numbers = #tpu.dot_dimension_numbers<[1], [0], [0], [1], [0, 0, 1, 1], [], []>} : vector<24x128xf32>, vector<128x128xf32>, vector<24x128xf32> -> vector<24x128xf32>
    %c0_51 = arith.constant 0 : index
    %c0_52 = arith.constant 0 : index
    %73 = vector.load %arg21[%c0_51, %c0_52] : memref<1x128xf32, #tpu.memory_space<vmem>>, vector<1x128xf32>
    %74 = vector.broadcast %73 : vector<1x128xf32> to vector<24x128xf32>
    %75 = arith.addf %72, %74 : vector<24x128xf32>
    %cst_53 = arith.constant 0.00999999977 : f32
    %76 = vector.broadcast %cst_53 : f32 to vector<24x128xf32>
    %77 = arith.mulf %76, %75 : vector<24x128xf32>
    %78 = arith.maximumf %75, %77 : vector<24x128xf32>
    %c0_54 = arith.constant 0 : index
    %c0_55 = arith.constant 0 : index
    %79 = vector.load %arg22[%c0_54, %c0_55] : memref<24x128xf32, #tpu.memory_space<vmem>>, vector<24x128xf32>
    tpu.vector_store %arg22[%c0_54, %c0_55], %78 {strides = array<i32>} : memref<24x128xf32, #tpu.memory_space<vmem>>, vector<24x128xf32>,
    return
  }
  func.func @transform_0(%arg0: i32) -> (i32, i32) {
    %c0_i32 = arith.constant 0 : i32
    %c0_i32_0 = arith.constant 0 : i32
    return %arg0, %c0_i32 : i32, i32
  }
  func.func @transform_1(%arg0: i32) -> (i32, i32) {
    %c0_i32 = arith.constant 0 : i32
    %c0_i32_0 = arith.constant 0 : i32
    %c0_i32_1 = arith.constant 0 : i32
    return %c0_i32, %c0_i32_0 : i32, i32
  }
  func.func @transform_2(%arg0: i32) -> (i32, i32) {
    %c0_i32 = arith.constant 0 : i32
    %c0_i32_0 = arith.constant 0 : i32
    %c0_i32_1 = arith.constant 0 : i32
    return %c0_i32, %c0_i32_0 : i32, i32
  }
  func.func @transform_3(%arg0: i32) -> (i32, i32) {
    %c0_i32 = arith.constant 0 : i32
    %c0_i32_0 = arith.constant 0 : i32
    %c0_i32_1 = arith.constant 0 : i32
    return %c0_i32, %c0_i32_0 : i32, i32
  }
  func.func @transform_4(%arg0: i32) -> (i32, i32) {
    %c0_i32 = arith.constant 0 : i32
    %c0_i32_0 = arith.constant 0 : i32
    %c0_i32_1 = arith.constant 0 : i32
    return %c0_i32, %c0_i32_0 : i32, i32
  }
  func.func @transform_5(%arg0: i32) -> (i32, i32) {
    %c0_i32 = arith.constant 0 : i32
    %c0_i32_0 = arith.constant 0 : i32
    %c0_i32_1 = arith.constant 0 : i32
    return %c0_i32, %c0_i32_0 : i32, i32
  }
  func.func @transform_6(%arg0: i32) -> (i32, i32) {
    %c0_i32 = arith.constant 0 : i32
    %c0_i32_0 = arith.constant 0 : i32
    %c0_i32_1 = arith.constant 0 : i32
    return %c0_i32, %c0_i32_0 : i32, i32
  }
  func.func @transform_7(%arg0: i32) -> (i32, i32) {
    %c0_i32 = arith.constant 0 : i32
    %c0_i32_0 = arith.constant 0 : i32
    %c0_i32_1 = arith.constant 0 : i32
    return %c0_i32, %c0_i32_0 : i32, i32
  }
  func.func @transform_8(%arg0: i32) -> (i32, i32) {
    %c0_i32 = arith.constant 0 : i32
    %c0_i32_0 = arith.constant 0 : i32
    %c0_i32_1 = arith.constant 0 : i32
    return %c0_i32, %c0_i32_0 : i32, i32
  }
  func.func @transform_9(%arg0: i32) -> (i32, i32) {
    %c0_i32 = arith.constant 0 : i32
    %c0_i32_0 = arith.constant 0 : i32
    %c0_i32_1 = arith.constant 0 : i32
    return %c0_i32, %c0_i32_0 : i32, i32
  }
  func.func @transform_10(%arg0: i32) -> (i32, i32) {
    %c0_i32 = arith.constant 0 : i32
    %c0_i32_0 = arith.constant 0 : i32
    %c0_i32_1 = arith.constant 0 : i32
    return %c0_i32, %c0_i32_0 : i32, i32
  }
  func.func @transform_11(%arg0: i32) -> (i32, i32) {
    %c0_i32 = arith.constant 0 : i32
    %c0_i32_0 = arith.constant 0 : i32
    %c0_i32_1 = arith.constant 0 : i32
    return %c0_i32, %c0_i32_0 : i32, i32
  }
  func.func @transform_12(%arg0: i32) -> (i32, i32) {
    %c0_i32 = arith.constant 0 : i32
    %c0_i32_0 = arith.constant 0 : i32
    %c0_i32_1 = arith.constant 0 : i32
    return %c0_i32, %c0_i32_0 : i32, i32
  }
  func.func @transform_13(%arg0: i32) -> (i32, i32) {
    %c0_i32 = arith.constant 0 : i32
    %c0_i32_0 = arith.constant 0 : i32
    %c0_i32_1 = arith.constant 0 : i32
    return %c0_i32, %c0_i32_0 : i32, i32
  }
  func.func @transform_14(%arg0: i32) -> (i32, i32) {
    %c0_i32 = arith.constant 0 : i32
    %c0_i32_0 = arith.constant 0 : i32
    %c0_i32_1 = arith.constant 0 : i32
    return %c0_i32, %c0_i32_0 : i32, i32
  }
  func.func @transform_15(%arg0: i32) -> (i32, i32) {
    %c0_i32 = arith.constant 0 : i32
    %c0_i32_0 = arith.constant 0 : i32
    %c0_i32_1 = arith.constant 0 : i32
    return %c0_i32, %c0_i32_0 : i32, i32
  }
  func.func @transform_16(%arg0: i32) -> (i32, i32) {
    %c0_i32 = arith.constant 0 : i32
    %c0_i32_0 = arith.constant 0 : i32
    %c0_i32_1 = arith.constant 0 : i32
    return %c0_i32, %c0_i32_0 : i32, i32
  }
  func.func @transform_17(%arg0: i32) -> (i32, i32) {
    %c0_i32 = arith.constant 0 : i32
    %c0_i32_0 = arith.constant 0 : i32
    %c0_i32_1 = arith.constant 0 : i32
    return %c0_i32, %c0_i32_0 : i32, i32
  }
  func.func @transform_18(%arg0: i32) -> (i32, i32) {
    %c0_i32 = arith.constant 0 : i32
    %c0_i32_0 = arith.constant 0 : i32
    %c0_i32_1 = arith.constant 0 : i32
    return %c0_i32, %c0_i32_0 : i32, i32
  }
  func.func @transform_19(%arg0: i32) -> (i32, i32) {
    %c0_i32 = arith.constant 0 : i32
    %c0_i32_0 = arith.constant 0 : i32
    %c0_i32_1 = arith.constant 0 : i32
    return %c0_i32, %c0_i32_0 : i32, i32
  }
  func.func @transform_20(%arg0: i32) -> (i32, i32) {
    %c0_i32 = arith.constant 0 : i32
    %c0_i32_0 = arith.constant 0 : i32
    %c0_i32_1 = arith.constant 0 : i32
    return %c0_i32, %c0_i32_0 : i32, i32
  }
  func.func @transform_21(%arg0: i32) -> (i32, i32) {
    %c0_i32 = arith.constant 0 : i32
    %c0_i32_0 = arith.constant 0 : i32
    return %arg0, %c0_i32 : i32, i32
  }
}

</mosaic_0001>

<llo_original>
// kernel: tpu_custom_call.1
$region0: #{tpu_custom_call.1}
  #allocation0 [shape = 'u32[]', space=smem, size = 0x4, offset = 0x4, fixed_abs, tag = 'smem constant byte address 0x4 - core index']
  #allocation1 [shape = 'u32[144,128]{1,0:T(1,128)}', space=vmem, size = 0x12000, scoped, tag = 'internal scratch']
  %s0 = inlined_call_operand.vmem [shape: f32[24,3], index: 0, kind: input, shape index: {}]
  %s1 = inlined_call_operand.vmem [shape: f32[1,128], index: 1, kind: input, shape index: {}]
  %s2 = inlined_call_operand.vmem [shape: f32[1,128], index: 2, kind: input, shape index: {}]
  %s3 = inlined_call_operand.hbm [shape: f32[128,128], index: 3, kind: input, shape index: {}]
  %s4 = inlined_call_operand.vmem [shape: f32[1,128], index: 4, kind: input, shape index: {}]
  %s5 = inlined_call_operand.vmem [shape: f32[1,128], index: 5, kind: input, shape index: {}]
  %s6 = inlined_call_operand.vmem [shape: f32[1,128], index: 6, kind: input, shape index: {}]
  %s7 = inlined_call_operand.hbm [shape: f32[128,128], index: 7, kind: input, shape index: {}]
  %s8 = inlined_call_operand.hbm [shape: f32[128,128], index: 8, kind: input, shape index: {}]
  %s9 = inlined_call_operand.vmem [shape: f32[1,128], index: 9, kind: input, shape index: {}]
  %s10 = inlined_call_operand.vmem [shape: f32[1,128], index: 10, kind: input, shape index: {}]
  %s11 = inlined_call_operand.vmem [shape: f32[1,128], index: 11, kind: input, shape index: {}]
  %s12 = inlined_call_operand.hbm [shape: f32[128,128], index: 12, kind: input, shape index: {}]
  %s13 = inlined_call_operand.hbm [shape: f32[128,128], index: 13, kind: input, shape index: {}]
  %s14 = inlined_call_operand.vmem [shape: f32[1,128], index: 14, kind: input, shape index: {}]
  %s15 = inlined_call_operand.hbm [shape: f32[128,128], index: 15, kind: input, shape index: {}]
  %s16 = inlined_call_operand.vmem [shape: f32[1,128], index: 16, kind: input, shape index: {}]
  %s17 = inlined_call_operand.hbm [shape: f32[128,128], index: 17, kind: input, shape index: {}]
  %s18 = inlined_call_operand.vmem [shape: f32[1,128], index: 18, kind: input, shape index: {}]
  %s19 = inlined_call_operand.hbm [shape: f32[128,128], index: 19, kind: input, shape index: {}]
  %s20 = inlined_call_operand.vmem [shape: f32[1,128], index: 20, kind: input, shape index: {}]
  %s21 = inlined_call_operand.hbm [shape: f32[24,128], index: 21, kind: output, shape index: {}]
  %s22 = sld [smem:[#allocation0]]
  $region126: #{tpu_custom_call.1} parent=0
    _
  %s24 = ssub.s32 1, %s22
  %s25 = scalar_select 0, %s24, %s22
  $region1: #{tpu_custom_call.1} parent=0
    #allocation2 [shape = 'u8[65536]{0}', space=vmem, size = 0x10000, scoped, tag = 'input window, operand 3, single buffered']
    #allocation3 [shape = 's32[1]{0}', space=sflag, size = 0x4, scoped, tag = 'scoped memory for tpu_custom_call.1']
    #allocation4 [shape = 's32[1]{0}', space=sflag, size = 0x4, scoped, tag = 'scoped memory for tpu_custom_call.1']
    #allocation5 [shape = 'u8[65536]{0}', space=vmem, size = 0x10000, scoped, tag = 'input window, operand 7, single buffered']
    #allocation6 [shape = 's32[1]{0}', space=sflag, size = 0x4, scoped, tag = 'scoped memory for tpu_custom_call.1']
    #allocation7 [shape = 'u8[65536]{0}', space=vmem, size = 0x10000, scoped, tag = 'input window, operand 8, single buffered']
    #allocation8 [shape = 'u8[65536]{0}', space=vmem, size = 0x10000, scoped, tag = 'input window, operand 12, single buffered']
    #allocation9 [shape = 's32[1]{0}', space=sflag, size = 0x4, scoped, tag = 'scoped memory for tpu_custom_call.1']
    #allocation10 [shape = 'u8[65536]{0}', space=vmem, size = 0x10000, scoped, tag = 'input window, operand 13, single buffered']
    #allocation11 [shape = 'u8[65536]{0}', space=vmem, size = 0x10000, scoped, tag = 'input window, operand 15, single buffered']
    #allocation12 [shape = 's32[1]{0}', space=sflag, size = 0x4, scoped, tag = 'scoped memory for tpu_custom_call.1']
    #allocation13 [shape = 'u8[65536]{0}', space=vmem, size = 0x10000, scoped, tag = 'input window, operand 17, single buffered']
    #allocation14 [shape = 'u8[65536]{0}', space=vmem, size = 0x10000, scoped, tag = 'input window, operand 19, single buffered']
    #allocation15 [shape = 's32[1]{0}', space=sflag, size = 0x4, scoped, tag = 'scoped memory for tpu_custom_call.1']
    #allocation16 [shape = 'u8[12288]{0}', space=vmem, size = 0x3000, scoped, tag = 'output window, operand 0, single buffered']
    %26 = vsyncpa [#allocation3], 0
    %27 = vsyncpa [#allocation6], 0
    %28 = vsyncpa [#allocation9], 0
    %29 = vsyncpa [#allocation12], 0
    %30 = vsyncpa [#allocation15], 0
    %31 = vsyncpa [#allocation4], 0
    // Predicated region
    $region2: #{tpu_custom_call.1} parent=1 // pred_check
      _
    $region3: #{tpu_custom_call.1} parent=1 // pred_check_branch
      %33 = sbr.rel (0) target = $region5
    $region4: #{tpu_custom_call.1} parent=1 // pred_region
      _
    $region5: #{tpu_custom_call.1} parent=1 // pred_fallthru
      _
    // Predicated region
    $region6: #{tpu_custom_call.1} parent=1 // pred_check
      _
    $region7: #{tpu_custom_call.1} parent=1 // pred_check_branch
      %35 = sbr.rel (0) target = $region9
    $region8: #{tpu_custom_call.1} parent=1 // pred_region
      _
    $region9: #{tpu_custom_call.1} parent=1 // pred_fallthru
      _
    // Predicated region
    $region10: #{tpu_custom_call.1} parent=1 // pred_check
      _
    $region11: #{tpu_custom_call.1} parent=1 // pred_check_branch
      %37 = sbr.rel (0) target = $region13
    $region12: #{tpu_custom_call.1} parent=1 // pred_region
      _
    $region13: #{tpu_custom_call.1} parent=1 // pred_fallthru
      _
    // Predicated region
    $region14: #{tpu_custom_call.1} parent=1 // pred_check
      _
    $region15: #{tpu_custom_call.1} parent=1 // pred_check_branch
      %39 = sbr.rel (0) target = $region17
    $region16: #{tpu_custom_call.1} parent=1 // pred_region
      %s41 = ssub.s32 2048, 2048
      %42 = vsyncadd [#allocation3], %s41
      %s43 = sshll.u32 [#allocation2], 4
      %s44 = int_to_ptr.vmem [resolvable:$true] %s43
      %49 = dma.hbm_to_vmem [thread:$0]  %s3, 2048, %s44, [#allocation3], 128, 128, 8
    $region17: #{tpu_custom_call.1} parent=1 // pred_fallthru
      _
    // Predicated region
    $region18: #{tpu_custom_call.1} parent=1 // pred_check
      _
    $region19: #{tpu_custom_call.1} parent=1 // pred_check_branch
      %51 = sbr.rel (0) target = $region21
    $region20: #{tpu_custom_call.1} parent=1 // pred_region
      _
    $region21: #{tpu_custom_call.1} parent=1 // pred_fallthru
      _
    // Predicated region
    $region22: #{tpu_custom_call.1} parent=1 // pred_check
      _
    $region23: #{tpu_custom_call.1} parent=1 // pred_check_branch
      %53 = sbr.rel (0) target = $region25
    $region24: #{tpu_custom_call.1} parent=1 // pred_region
      _
    $region25: #{tpu_custom_call.1} parent=1 // pred_fallthru
      _
    // Predicated region
    $region26: #{tpu_custom_call.1} parent=1 // pred_check
      _
    $region27: #{tpu_custom_call.1} parent=1 // pred_check_branch
      %55 = sbr.rel (0) target = $region29
    $region28: #{tpu_custom_call.1} parent=1 // pred_region
      _
    $region29: #{tpu_custom_call.1} parent=1 // pred_fallthru
      _
    // Predicated region
    $region30: #{tpu_custom_call.1} parent=1 // pred_check
      _
    $region31: #{tpu_custom_call.1} parent=1 // pred_check_branch
      %57 = sbr.rel (0) target = $region33
    $region32: #{tpu_custom_call.1} parent=1 // pred_region
      %s59 = ssub.s32 2048, 2048
      %60 = vsyncadd [#allocation6], %s59
      %s61 = sshll.u32 [#allocation5], 4
      %s62 = int_to_ptr.vmem [resolvable:$true] %s61
      %67 = dma.hbm_to_vmem [thread:$0]  %s7, 2048, %s62, [#allocation6], 128, 128, 8
    $region33: #{tpu_custom_call.1} parent=1 // pred_fallthru
      _
    // Predicated region
    $region34: #{tpu_custom_call.1} parent=1 // pred_check
      _
    $region35: #{tpu_custom_call.1} parent=1 // pred_check_branch
      %69 = sbr.rel (0) target = $region37
    $region36: #{tpu_custom_call.1} parent=1 // pred_region
      %s71 = ssub.s32 2048, 2048
      %72 = vsyncadd [#allocation6], %s71
      %s73 = sshll.u32 [#allocation7], 4
      %s74 = int_to_ptr.vmem [resolvable:$true] %s73
      %79 = dma.hbm_to_vmem [thread:$0]  %s8, 2048, %s74, [#allocation6], 128, 128, 8
    $region37: #{tpu_custom_call.1} parent=1 // pred_fallthru
      _
    // Predicated region
    $region38: #{tpu_custom_call.1} parent=1 // pred_check
      _
    $region39: #{tpu_custom_call.1} parent=1 // pred_check_branch
      %81 = sbr.rel (0) target = $region41
    $region40: #{tpu_custom_call.1} parent=1 // pred_region
      _
    $region41: #{tpu_custom_call.1} parent=1 // pred_fallthru
      _
    // Predicated region
    $region42: #{tpu_custom_call.1} parent=1 // pred_check
      _
    $region43: #{tpu_custom_call.1} parent=1 // pred_check_branch
      %83 = sbr.rel (0) target = $region45
    $region44: #{tpu_custom_call.1} parent=1 // pred_region
      _
    $region45: #{tpu_custom_call.1} parent=1 // pred_fallthru
      _
    // Predicated region
    $region46: #{tpu_custom_call.1} parent=1 // pred_check
      _
    $region47: #{tpu_custom_call.1} parent=1 // pred_check_branch
      %85 = sbr.rel (0) target = $region49
    $region48: #{tpu_custom_call.1} parent=1 // pred_region
      _
    $region49: #{tpu_custom_call.1} parent=1 // pred_fallthru
      _
    // Predicated region
    $region50: #{tpu_custom_call.1} parent=1 // pred_check
      _
    $region51: #{tpu_custom_call.1} parent=1 // pred_check_branch
      %87 = sbr.rel (0) target = $region53
    $region52: #{tpu_custom_call.1} parent=1 // pred_region
      %s89 = ssub.s32 2048, 2048
      %90 = vsyncadd [#allocation9], %s89
      %s91 = sshll.u32 [#allocation8], 4
      %s92 = int_to_ptr.vmem [resolvable:$true] %s91
      %97 = dma.hbm_to_vmem [thread:$0]  %s12, 2048, %s92, [#allocation9], 128, 128, 8
    $region53: #{tpu_custom_call.1} parent=1 // pred_fallthru
      _
    // Predicated region
    $region54: #{tpu_custom_call.1} parent=1 // pred_check
      _
    $region55: #{tpu_custom_call.1} parent=1 // pred_check_branch
      %99 = sbr.rel (0) target = $region57
    $region56: #{tpu_custom_call.1} parent=1 // pred_region
      %s101 = ssub.s32 2048, 2048
      %102 = vsyncadd [#allocation9], %s101
      %s103 = sshll.u32 [#allocation10], 4
      %s104 = int_to_ptr.vmem [resolvable:$true] %s103
      %109 = dma.hbm_to_vmem [thread:$0]  %s13, 2048, %s104, [#allocation9], 128, 128, 8
    $region57: #{tpu_custom_call.1} parent=1 // pred_fallthru
      _
    // Predicated region
    $region58: #{tpu_custom_call.1} parent=1 // pred_check
      _
    $region59: #{tpu_custom_call.1} parent=1 // pred_check_branch
      %111 = sbr.rel (0) target = $region61
    $region60: #{tpu_custom_call.1} parent=1 // pred_region
      _
    $region61: #{tpu_custom_call.1} parent=1 // pred_fallthru
      _
    // Predicated region
    $region62: #{tpu_custom_call.1} parent=1 // pred_check
      _
    $region63: #{tpu_custom_call.1} parent=1 // pred_check_branch
      %113 = sbr.rel (0) target = $region65
    $region64: #{tpu_custom_call.1} parent=1 // pred_region
      %s115 = ssub.s32 2048, 2048
      %116 = vsyncadd [#allocation12], %s115
      %s117 = sshll.u32 [#allocation11], 4
      %s118 = int_to_ptr.vmem [resolvable:$true] %s117
      %123 = dma.hbm_to_vmem [thread:$0]  %s15, 2048, %s118, [#allocation12], 128, 128, 8
    $region65: #{tpu_custom_call.1} parent=1 // pred_fallthru
      _
    // Predicated region
    $region66: #{tpu_custom_call.1} parent=1 // pred_check
      _
    $region67: #{tpu_custom_call.1} parent=1 // pred_check_branch
      %125 = sbr.rel (0) target = $region69
    $region68: #{tpu_custom_call.1} parent=1 // pred_region
      _
    $region69: #{tpu_custom_call.1} parent=1 // pred_fallthru
      _
    // Predicated region
    $region70: #{tpu_custom_call.1} parent=1 // pred_check
      _
    $region71: #{tpu_custom_call.1} parent=1 // pred_check_branch
      %127 = sbr.rel (0) target = $region73
    $region72: #{tpu_custom_call.1} parent=1 // pred_region
      %s129 = ssub.s32 2048, 2048
      %130 = vsyncadd [#allocation12], %s129
      %s131 = sshll.u32 [#allocation13], 4
      %s132 = int_to_ptr.vmem [resolvable:$true] %s131
      %137 = dma.hbm_to_vmem [thread:$0]  %s17, 2048, %s132, [#allocation12], 128, 128, 8
    $region73: #{tpu_custom_call.1} parent=1 // pred_fallthru
      _
    // Predicated region
    $region74: #{tpu_custom_call.1} parent=1 // pred_check
      _
    $region75: #{tpu_custom_call.1} parent=1 // pred_check_branch
      %139 = sbr.rel (0) target = $region77
    $region76: #{tpu_custom_call.1} parent=1 // pred_region
      _
    $region77: #{tpu_custom_call.1} parent=1 // pred_fallthru
      _
    // Predicated region
    $region78: #{tpu_custom_call.1} parent=1 // pred_check
      _
    $region79: #{tpu_custom_call.1} parent=1 // pred_check_branch
      %141 = sbr.rel (0) target = $region81
    $region80: #{tpu_custom_call.1} parent=1 // pred_region
      %s143 = ssub.s32 2048, 2048
      %144 = vsyncadd [#allocation15], %s143
      %s145 = sshll.u32 [#allocation14], 4
      %s146 = int_to_ptr.vmem [resolvable:$true] %s145
      %151 = dma.hbm_to_vmem [thread:$0]  %s19, 2048, %s146, [#allocation15], 128, 128, 8
    $region81: #{tpu_custom_call.1} parent=1 // pred_fallthru
      _
    // Predicated region
    $region82: #{tpu_custom_call.1} parent=1 // pred_check
      _
    $region83: #{tpu_custom_call.1} parent=1 // pred_check_branch
      %153 = sbr.rel (0) target = $region85
    $region84: #{tpu_custom_call.1} parent=1 // pred_region
      _
    $region85: #{tpu_custom_call.1} parent=1 // pred_fallthru
      _
    // Predicated region
    $region86: #{tpu_custom_call.1} parent=1 // pred_check
      _
    $region87: #{tpu_custom_call.1} parent=1 // pred_check_branch
      %155 = sbr.rel (0) target = $region89
    $region88: #{tpu_custom_call.1} parent=1 // pred_region
      %156 = dma.done [#allocation3], 2048
    $region89: #{tpu_custom_call.1} parent=1 // pred_fallthru
      _
    // Predicated region
    $region90: #{tpu_custom_call.1} parent=1 // pred_check
      _
    $region91: #{tpu_custom_call.1} parent=1 // pred_check_branch
      %158 = sbr.rel (0) target = $region93
    $region92: #{tpu_custom_call.1} parent=1 // pred_region
      %159 = dma.done [#allocation6], 2048
    $region93: #{tpu_custom_call.1} parent=1 // pred_fallthru
      _
    // Predicated region
    $region94: #{tpu_custom_call.1} parent=1 // pred_check
      _
    $region95: #{tpu_custom_call.1} parent=1 // pred_check_branch
      %161 = sbr.rel (0) target = $region97
    $region96: #{tpu_custom_call.1} parent=1 // pred_region
      %162 = dma.done [#allocation6], 2048
    $region97: #{tpu_custom_call.1} parent=1 // pred_fallthru
      _
    // Predicated region
    $region98: #{tpu_custom_call.1} parent=1 // pred_check
      _
    $region99: #{tpu_custom_call.1} parent=1 // pred_check_branch
      %164 = sbr.rel (0) target = $region101
    $region100: #{tpu_custom_call.1} parent=1 // pred_region
      %165 = dma.done [#allocation9], 2048
    $region101: #{tpu_custom_call.1} parent=1 // pred_fallthru
      _
    // Predicated region
    $region102: #{tpu_custom_call.1} parent=1 // pred_check
      _
    $region103: #{tpu_custom_call.1} parent=1 // pred_check_branch
      %167 = sbr.rel (0) target = $region105
    $region104: #{tpu_custom_call.1} parent=1 // pred_region
      %168 = dma.done [#allocation9], 2048
    $region105: #{tpu_custom_call.1} parent=1 // pred_fallthru
      _
    // Predicated region
    $region106: #{tpu_custom_call.1} parent=1 // pred_check
      _
    $region107: #{tpu_custom_call.1} parent=1 // pred_check_branch
      %170 = sbr.rel (0) target = $region109
    $region108: #{tpu_custom_call.1} parent=1 // pred_region
      %171 = dma.done [#allocation12], 2048
    $region109: #{tpu_custom_call.1} parent=1 // pred_fallthru
      _
    // Predicated region
    $region110: #{tpu_custom_call.1} parent=1 // pred_check
      _
    $region111: #{tpu_custom_call.1} parent=1 // pred_check_branch
      %173 = sbr.rel (0) target = $region113
    $region112: #{tpu_custom_call.1} parent=1 // pred_region
      %174 = dma.done [#allocation12], 2048
    $region113: #{tpu_custom_call.1} parent=1 // pred_fallthru
      _
    // Predicated region
    $region114: #{tpu_custom_call.1} parent=1 // pred_check
      _
    $region115: #{tpu_custom_call.1} parent=1 // pred_check_branch
      %176 = sbr.rel (0) target = $region117
    $region116: #{tpu_custom_call.1} parent=1 // pred_region
      %177 = dma.done [#allocation15], 2048
    $region117: #{tpu_custom_call.1} parent=1 // pred_fallthru
      _
    %v178 = vld [vmem:[%s0] sm:$0xff]
    %v179 = vld [vmem:[%s0 + $0x8] sm:$0xff]
    %v180 = vld [vmem:[%s0 + $0x10] sm:$0xff]
    %v181 = vld [vmem:[%s1] sm:$0x1]
    %183 = vset.pattern.permute.xlu0 0
    %184 = vperm.xlu0 %183, %v178
    %v185 = vpop.permute.xlu0 %184
    %188 = vset.pattern.permute.xlu0 0
    %189 = vperm.xlu0 %188, %v179
    %v190 = vpop.permute.xlu0 %189
    %193 = vset.pattern.permute.xlu0 0
    %194 = vperm.xlu0 %193, %v180
    %v195 = vpop.permute.xlu0 %194
    %v198 = vlaneseq
    %v199 = vshrl.u32 %v198, 7
    %v200 = vsub.s32 0, %v199
    %v201 = vrot.slane %v181, %v200
    %v203 = vmul.f32 %v185, %v201
    %v204 = vmul.f32 %v190, %v201
    %v205 = vmul.f32 %v195, %v201
    %v206 = vld [vmem:[%s2] sm:$0x1]
    %v208 = vlaneseq
    %v209 = vshrl.u32 %v208, 7
    %v210 = vsub.s32 0, %v209
    %v211 = vrot.slane %v206, %v210
    %v213 = vadd.f32 %v203, %v211
    %v214 = vadd.f32 %v204, %v211
    %v215 = vadd.f32 %v205, %v211
    %v216 = vld [vmem:[#allocation2] sm:$0xff]
    %v217 = vld [vmem:[#allocation2 + $0x8] sm:$0xff]
    %v218 = vld [vmem:[#allocation2 + $0x10] sm:$0xff]
    %v219 = vld [vmem:[#allocation2 + $0x18] sm:$0xff]
    %v220 = vld [vmem:[#allocation2 + $0x20] sm:$0xff]
    %v221 = vld [vmem:[#allocation2 + $0x28] sm:$0xff]
    %v222 = vld [vmem:[#allocation2 + $0x30] sm:$0xff]
    %v223 = vld [vmem:[#allocation2 + $0x38] sm:$0xff]
    %v224 = vld [vmem:[#allocation2 + $0x40] sm:$0xff]
    %v225 = vld [vmem:[#allocation2 + $0x48] sm:$0xff]
    %v226 = vld [vmem:[#allocation2 + $0x50] sm:$0xff]
    %v227 = vld [vmem:[#allocation2 + $0x58] sm:$0xff]
    %v228 = vld [vmem:[#allocation2 + $0x60] sm:$0xff]
    %v229 = vld [vmem:[#allocation2 + $0x68] sm:$0xff]
    %v230 = vld [vmem:[#allocation2 + $0x70] sm:$0xff]
    %v231 = vld [vmem:[#allocation2 + $0x78] sm:$0xff]
    %v232 = vld [vmem:[%s4] sm:$0x1]
    %v234 = vlaneseq
    %v235 = vshrl.u32 %v234, 7
    %v236 = vsub.s32 0, %v235
    %v237 = vrot.slane %v232, %v236
    %239 = vmatprep.subr.mxu0 0.0
    %240 = vmatpush1.msra.mxu0 %v231
    %241 = vmatprep.subr.mxu0 0.0
    %242 = vmatpush1.msra.mxu0 %v230
    %243 = vmatprep.subr.mxu0 0.0
    %244 = vmatpush1.msra.mxu0 %v229
    %245 = vmatprep.subr.mxu0 0.0
    %246 = vmatpush1.msra.mxu0 %v228
    %247 = vmatprep.subr.mxu0 0.0
    %248 = vmatpush1.msra.mxu0 %v227
    %249 = vmatprep.subr.mxu0 0.0
    %250 = vmatpush1.msra.mxu0 %v226
    %251 = vmatprep.subr.mxu0 0.0
    %252 = vmatpush1.msra.mxu0 %v225
    %253 = vmatprep.subr.mxu0 0.0
    %254 = vmatpush1.msra.mxu0 %v224
    %255 = vmatprep.subr.mxu0 0.0
    %256 = vmatpush1.msra.mxu0 %v223
    %257 = vmatprep.subr.mxu0 0.0
    %258 = vmatpush1.msra.mxu0 %v222
    %259 = vmatprep.subr.mxu0 0.0
    %260 = vmatpush1.msra.mxu0 %v221
    %261 = vmatprep.subr.mxu0 0.0
    %262 = vmatpush1.msra.mxu0 %v220
    %263 = vmatprep.subr.mxu0 0.0
    %264 = vmatpush1.msra.mxu0 %v219
    %265 = vmatprep.subr.mxu0 0.0
    %266 = vmatpush1.msra.mxu0 %v218
    %267 = vmatprep.subr.mxu0 0.0
    %268 = vmatpush1.msra.mxu0 %v217
    %269 = vmatprep.subr.mxu0 0.0
    %270 = vmatpush1.msra.mxu0 %v216
    %271 = vmatprep.subr.mxu0 0.0
    %272 = vmatpush2.msra.mxu0 0.0
    %273 = vmatprep.subr.mxu0 0.0
    %274 = vmatpush2.msra.mxu0 0.0
    %275 = vmatprep.subr.mxu0 0.0
    %276 = vmatpush2.msra.mxu0 0.0
    %277 = vmatprep.subr.mxu0 0.0
    %278 = vmatpush2.msra.mxu0 0.0
    %279 = vmatprep.subr.mxu0 0.0
    %280 = vmatpush2.msra.mxu0 0.0
    %281 = vmatprep.subr.mxu0 0.0
    %282 = vmatpush2.msra.mxu0 0.0
    %283 = vmatprep.subr.mxu0 0.0
    %284 = vmatpush2.msra.mxu0 0.0
    %285 = vmatprep.subr.mxu0 0.0
    %286 = vmatpush2.msra.mxu0 0.0
    %287 = vmatprep.subr.mxu0 0.0
    %288 = vmatpush2.msra.mxu0 0.0
    %289 = vmatprep.subr.mxu0 0.0
    %290 = vmatpush2.msra.mxu0 0.0
    %291 = vmatprep.subr.mxu0 0.0
    %292 = vmatpush2.msra.mxu0 0.0
    %293 = vmatprep.subr.mxu0 0.0
    %294 = vmatpush2.msra.mxu0 0.0
    %295 = vmatprep.subr.mxu0 0.0
    %296 = vmatpush2.msra.mxu0 0.0
    %297 = vmatprep.subr.mxu0 0.0
    %298 = vmatpush2.msra.mxu0 0.0
    %299 = vmatprep.subr.mxu0 0.0
    %300 = vmatpush2.msra.mxu0 0.0
    %301 = vmatprep.subr.mxu0 0.0
    %302 = vmatpush2.msra.mxu0 0.0
    %303 = vmatprep.mubr.f32.mxu0 0.0
    %304 = vmatmul.mubr.f32.gmra.mxu0 %v213
    %v305 = vpop.f32.mrf.mxu0
    %v306 = vadd.f32 %v237, %v305
    %v307 = vpop.f32.mrf.mxu0
    %308 = vmatprep.mubr.f32.mxu0 0.0
    %309 = vmatmul.mubr.f32.gmra.mxu0 %v214
    %v310 = vpop.f32.mrf.mxu0
    %v311 = vadd.f32 %v237, %v310
    %v312 = vpop.f32.mrf.mxu0
    %313 = vmatprep.mubr.f32.mxu0 0.0
    %314 = vmatmul.mubr.f32.gmra.mxu0 %v215
    %v315 = vpop.f32.mrf.mxu0
    %v316 = vadd.f32 %v237, %v315
    %v317 = vpop.f32.mrf.mxu0
    %318 = vdwg.mxu0
    %v319 = vmul.f32 %v306, 0.01
    %v320 = vmul.f32 %v311, 0.01
    %v321 = vmul.f32 %v316, 0.01
    %v322 = vmax.f32 %v306, %v319
    %v323 = vmax.f32 %v311, %v320
    %v324 = vmax.f32 %v316, %v321
    %v325 = vld [vmem:[%s5] sm:$0x1]
    %326 = vset.pattern.permute.xlu0 1
    %327 = vperm.xlu0 %326, %v178
    %v328 = vpop.permute.xlu0 %327
    %330 = vset.pattern.permute.xlu0 1
    %331 = vperm.xlu0 %330, %v179
    %v332 = vpop.permute.xlu0 %331
    %334 = vset.pattern.permute.xlu0 1
    %335 = vperm.xlu0 %334, %v180
    %v336 = vpop.permute.xlu0 %335
    %v339 = vlaneseq
    %v340 = vshrl.u32 %v339, 7
    %v341 = vsub.s32 0, %v340
    %v342 = vrot.slane %v325, %v341
    %v344 = vmul.f32 %v328, %v342
    %v345 = vmul.f32 %v332, %v342
    %v346 = vmul.f32 %v336, %v342
    %v347 = vld [vmem:[%s6] sm:$0x1]
    %v349 = vlaneseq
    %v350 = vshrl.u32 %v349, 7
    %v351 = vsub.s32 0, %v350
    %v352 = vrot.slane %v347, %v351
    %v354 = vadd.f32 %v344, %v352
    %v355 = vadd.f32 %v345, %v352
    %v356 = vadd.f32 %v346, %v352
    %v357 = vld [vmem:[#allocation5] sm:$0xff]
    %v358 = vld [vmem:[#allocation5 + $0x8] sm:$0xff]
    %v359 = vld [vmem:[#allocation5 + $0x10] sm:$0xff]
    %v360 = vld [vmem:[#allocation5 + $0x18] sm:$0xff]
    %v361 = vld [vmem:[#allocation5 + $0x20] sm:$0xff]
    %v362 = vld [vmem:[#allocation5 + $0x28] sm:$0xff]
    %v363 = vld [vmem:[#allocation5 + $0x30] sm:$0xff]
    %v364 = vld [vmem:[#allocation5 + $0x38] sm:$0xff]
    %v365 = vld [vmem:[#allocation5 + $0x40] sm:$0xff]
    %v366 = vld [vmem:[#allocation5 + $0x48] sm:$0xff]
    %v367 = vld [vmem:[#allocation5 + $0x50] sm:$0xff]
    %v368 = vld [vmem:[#allocation5 + $0x58] sm:$0xff]
    %v369 = vld [vmem:[#allocation5 + $0x60] sm:$0xff]
    %v370 = vld [vmem:[#allocation5 + $0x68] sm:$0xff]
    %v371 = vld [vmem:[#allocation5 + $0x70] sm:$0xff]
    %v372 = vld [vmem:[#allocation5 + $0x78] sm:$0xff]
    %v373 = vld [vmem:[#allocation7] sm:$0xff]
    %v374 = vld [vmem:[#allocation7 + $0x8] sm:$0xff]
    %v375 = vld [vmem:[#allocation7 + $0x10] sm:$0xff]
    %v376 = vld [vmem:[#allocation7 + $0x18] sm:$0xff]
    %v377 = vld [vmem:[#allocation7 + $0x20] sm:$0xff]
    %v378 = vld [vmem:[#allocation7 + $0x28] sm:$0xff]
    %v379 = vld [vmem:[#allocation7 + $0x30] sm:$0xff]
    %v380 = vld [vmem:[#allocation7 + $0x38] sm:$0xff]
    %v381 = vld [vmem:[#allocation7 + $0x40] sm:$0xff]
    %v382 = vld [vmem:[#allocation7 + $0x48] sm:$0xff]
    %v383 = vld [vmem:[#allocation7 + $0x50] sm:$0xff]
    %v384 = vld [vmem:[#allocation7 + $0x58] sm:$0xff]
    %v385 = vld [vmem:[#allocation7 + $0x60] sm:$0xff]
    %v386 = vld [vmem:[#allocation7 + $0x68] sm:$0xff]
    %v387 = vld [vmem:[#allocation7 + $0x70] sm:$0xff]
    %v388 = vld [vmem:[#allocation7 + $0x78] sm:$0xff]
    %389 = vmatprep.subr.mxu0 0.0
    %390 = vmatpush1.msra.mxu0 %v388
    %391 = vmatprep.subr.mxu0 0.0
    %392 = vmatpush1.msra.mxu0 %v387
    %393 = vmatprep.subr.mxu0 0.0
    %394 = vmatpush1.msra.mxu0 %v386
    %395 = vmatprep.subr.mxu0 0.0
    %396 = vmatpush1.msra.mxu0 %v385
    %397 = vmatprep.subr.mxu0 0.0
    %398 = vmatpush1.msra.mxu0 %v384
    %399 = vmatprep.subr.mxu0 0.0
    %400 = vmatpush1.msra.mxu0 %v383
    %401 = vmatprep.subr.mxu0 0.0
    %402 = vmatpush1.msra.mxu0 %v382
    %403 = vmatprep.subr.mxu0 0.0
    %404 = vmatpush1.msra.mxu0 %v381
    %405 = vmatprep.subr.mxu0 0.0
    %406 = vmatpush1.msra.mxu0 %v380
    %407 = vmatprep.subr.mxu0 0.0
    %408 = vmatpush1.msra.mxu0 %v379
    %409 = vmatprep.subr.mxu0 0.0
    %410 = vmatpush1.msra.mxu0 %v378
    %411 = vmatprep.subr.mxu0 0.0
    %412 = vmatpush1.msra.mxu0 %v377
    %413 = vmatprep.subr.mxu0 0.0
    %414 = vmatpush1.msra.mxu0 %v376
    %415 = vmatprep.subr.mxu0 0.0
    %416 = vmatpush1.msra.mxu0 %v375
    %417 = vmatprep.subr.mxu0 0.0
    %418 = vmatpush1.msra.mxu0 %v374
    %419 = vmatprep.subr.mxu0 0.0
    %420 = vmatpush1.msra.mxu0 %v373
    %421 = vmatprep.subr.mxu0 0.0
    %422 = vmatpush2.msra.mxu0 0.0
    %423 = vmatprep.subr.mxu0 0.0
    %424 = vmatpush2.msra.mxu0 0.0
    %425 = vmatprep.subr.mxu0 0.0
    %426 = vmatpush2.msra.mxu0 0.0
    %427 = vmatprep.subr.mxu0 0.0
    %428 = vmatpush2.msra.mxu0 0.0
    %429 = vmatprep.subr.mxu0 0.0
    %430 = vmatpush2.msra.mxu0 0.0
    %431 = vmatprep.subr.mxu0 0.0
    %432 = vmatpush2.msra.mxu0 0.0
    %433 = vmatprep.subr.mxu0 0.0
    %434 = vmatpush2.msra.mxu0 0.0
    %435 = vmatprep.subr.mxu0 0.0
    %436 = vmatpush2.msra.mxu0 0.0
    %437 = vmatprep.subr.mxu0 0.0
    %438 = vmatpush2.msra.mxu0 0.0
    %439 = vmatprep.subr.mxu0 0.0
    %440 = vmatpush2.msra.mxu0 0.0
    %441 = vmatprep.subr.mxu0 0.0
    %442 = vmatpush2.msra.mxu0 0.0
    %443 = vmatprep.subr.mxu0 0.0
    %444 = vmatpush2.msra.mxu0 0.0
    %445 = vmatprep.subr.mxu0 0.0
    %446 = vmatpush2.msra.mxu0 0.0
    %447 = vmatprep.subr.mxu0 0.0
    %448 = vmatpush2.msra.mxu0 0.0
    %449 = vmatprep.subr.mxu0 0.0
    %450 = vmatpush2.msra.mxu0 0.0
    %451 = vmatprep.subr.mxu0 0.0
    %452 = vmatpush2.msra.mxu0 0.0
    %453 = vmatprep.mubr.f32.mxu0 0.0
    %454 = vmatmul.mubr.f32.gmra.mxu0 %v354
    %v455 = vpop.f32.mrf.mxu0
    %v456 = vadd.f32 0.0, %v455
    %v457 = vpop.f32.mrf.mxu0
    %458 = vmatprep.mubr.f32.mxu0 0.0
    %459 = vmatmul.mubr.f32.gmra.mxu0 %v355
    %v460 = vpop.f32.mrf.mxu0
    %v461 = vadd.f32 0.0, %v460
    %v462 = vpop.f32.mrf.mxu0
    %463 = vmatprep.mubr.f32.mxu0 0.0
    %464 = vmatmul.mubr.f32.gmra.mxu0 %v356
    %v465 = vpop.f32.mrf.mxu0
    %v466 = vadd.f32 0.0, %v465
    %v467 = vpop.f32.mrf.mxu0
    %468 = vdwg.mxu0
    %469 = vmatprep.subr.mxu0 0.0
    %470 = vmatpush1.msra.mxu0 %v372
    %471 = vmatprep.subr.mxu0 0.0
    %472 = vmatpush1.msra.mxu0 %v371
    %473 = vmatprep.subr.mxu0 0.0
    %474 = vmatpush1.msra.mxu0 %v370
    %475 = vmatprep.subr.mxu0 0.0
    %476 = vmatpush1.msra.mxu0 %v369
    %477 = vmatprep.subr.mxu0 0.0
    %478 = vmatpush1.msra.mxu0 %v368
    %479 = vmatprep.subr.mxu0 0.0
    %480 = vmatpush1.msra.mxu0 %v367
    %481 = vmatprep.subr.mxu0 0.0
    %482 = vmatpush1.msra.mxu0 %v366
    %483 = vmatprep.subr.mxu0 0.0
    %484 = vmatpush1.msra.mxu0 %v365
    %485 = vmatprep.subr.mxu0 0.0
    %486 = vmatpush1.msra.mxu0 %v364
    %487 = vmatprep.subr.mxu0 0.0
    %488 = vmatpush1.msra.mxu0 %v363
    %489 = vmatprep.subr.mxu0 0.0
    %490 = vmatpush1.msra.mxu0 %v362
    %491 = vmatprep.subr.mxu0 0.0
    %492 = vmatpush1.msra.mxu0 %v361
    %493 = vmatprep.subr.mxu0 0.0
    %494 = vmatpush1.msra.mxu0 %v360
    %495 = vmatprep.subr.mxu0 0.0
    %496 = vmatpush1.msra.mxu0 %v359
    %497 = vmatprep.subr.mxu0 0.0
    %498 = vmatpush1.msra.mxu0 %v358
    %499 = vmatprep.subr.mxu0 0.0
    %500 = vmatpush1.msra.mxu0 %v357
    %501 = vmatprep.subr.mxu0 0.0
    %502 = vmatpush2.msra.mxu0 0.0
    %503 = vmatprep.subr.mxu0 0.0
    %504 = vmatpush2.msra.mxu0 0.0
    %505 = vmatprep.subr.mxu0 0.0
    %506 = vmatpush2.msra.mxu0 0.0
    %507 = vmatprep.subr.mxu0 0.0
    %508 = vmatpush2.msra.mxu0 0.0
    %509 = vmatprep.subr.mxu0 0.0
    %510 = vmatpush2.msra.mxu0 0.0
    %511 = vmatprep.subr.mxu0 0.0
    %512 = vmatpush2.msra.mxu0 0.0
    %513 = vmatprep.subr.mxu0 0.0
    %514 = vmatpush2.msra.mxu0 0.0
    %515 = vmatprep.subr.mxu0 0.0
    %516 = vmatpush2.msra.mxu0 0.0
    %517 = vmatprep.subr.mxu0 0.0
    %518 = vmatpush2.msra.mxu0 0.0
    %519 = vmatprep.subr.mxu0 0.0
    %520 = vmatpush2.msra.mxu0 0.0
    %521 = vmatprep.subr.mxu0 0.0
    %522 = vmatpush2.msra.mxu0 0.0
    %523 = vmatprep.subr.mxu0 0.0
    %524 = vmatpush2.msra.mxu0 0.0
    %525 = vmatprep.subr.mxu0 0.0
    %526 = vmatpush2.msra.mxu0 0.0
    %527 = vmatprep.subr.mxu0 0.0
    %528 = vmatpush2.msra.mxu0 0.0
    %529 = vmatprep.subr.mxu0 0.0
    %530 = vmatpush2.msra.mxu0 0.0
    %531 = vmatprep.subr.mxu0 0.0
    %532 = vmatpush2.msra.mxu0 0.0
    %533 = vmatprep.mubr.f32.mxu0 0.0
    %534 = vmatmul.mubr.f32.gmra.mxu0 %v322
    %v535 = vpop.f32.mrf.mxu0
    %v536 = vadd.f32 %v456, %v535
    %v537 = vpop.f32.mrf.mxu0
    %538 = vmatprep.mubr.f32.mxu0 0.0
    %539 = vmatmul.mubr.f32.gmra.mxu0 %v323
    %v540 = vpop.f32.mrf.mxu0
    %v541 = vadd.f32 %v461, %v540
    %v542 = vpop.f32.mrf.mxu0
    %543 = vmatprep.mubr.f32.mxu0 0.0
    %544 = vmatmul.mubr.f32.gmra.mxu0 %v324
    %v545 = vpop.f32.mrf.mxu0
    %v546 = vadd.f32 %v466, %v545
    %v547 = vpop.f32.mrf.mxu0
    %548 = vdwg.mxu0
    %v549 = vld [vmem:[%s9] sm:$0x1]
    %v551 = vlaneseq
    %v552 = vshrl.u32 %v551, 7
    %v553 = vsub.s32 0, %v552
    %v554 = vrot.slane %v549, %v553
    %v556 = vadd.f32 %v536, %v554
    %v557 = vadd.f32 %v541, %v554
    %v558 = vadd.f32 %v546, %v554
    %v559 = vmul.f32 %v556, 0.01
    %v560 = vmul.f32 %v557, 0.01
    %v561 = vmul.f32 %v558, 0.01
    %v562 = vmax.f32 %v556, %v559
    %v563 = vmax.f32 %v557, %v560
    %v564 = vmax.f32 %v558, %v561
    %v565 = vld [vmem:[%s10] sm:$0x1]
    %566 = vset.pattern.permute.xlu0 2
    %567 = vperm.xlu0 %566, %v178
    %v568 = vpop.permute.xlu0 %567
    %570 = vset.pattern.permute.xlu0 2
    %571 = vperm.xlu0 %570, %v179
    %v572 = vpop.permute.xlu0 %571
    %574 = vset.pattern.permute.xlu0 2
    %575 = vperm.xlu0 %574, %v180
    %v576 = vpop.permute.xlu0 %575
    %v579 = vlaneseq
    %v580 = vshrl.u32 %v579, 7
    %v581 = vsub.s32 0, %v580
    %v582 = vrot.slane %v565, %v581
    %v584 = vmul.f32 %v568, %v582
    %v585 = vmul.f32 %v572, %v582
    %v586 = vmul.f32 %v576, %v582
    %v587 = vld [vmem:[%s11] sm:$0x1]
    %v589 = vlaneseq
    %v590 = vshrl.u32 %v589, 7
    %v591 = vsub.s32 0, %v590
    %v592 = vrot.slane %v587, %v591
    %v594 = vadd.f32 %v584, %v592
    %v595 = vadd.f32 %v585, %v592
    %v596 = vadd.f32 %v586, %v592
    %v597 = vld [vmem:[#allocation8] sm:$0xff]
    %v598 = vld [vmem:[#allocation8 + $0x8] sm:$0xff]
    %v599 = vld [vmem:[#allocation8 + $0x10] sm:$0xff]
    %v600 = vld [vmem:[#allocation8 + $0x18] sm:$0xff]
    %v601 = vld [vmem:[#allocation8 + $0x20] sm:$0xff]
    %v602 = vld [vmem:[#allocation8 + $0x28] sm:$0xff]
    %v603 = vld [vmem:[#allocation8 + $0x30] sm:$0xff]
    %v604 = vld [vmem:[#allocation8 + $0x38] sm:$0xff]
    %v605 = vld [vmem:[#allocation8 + $0x40] sm:$0xff]
    %v606 = vld [vmem:[#allocation8 + $0x48] sm:$0xff]
    %v607 = vld [vmem:[#allocation8 + $0x50] sm:$0xff]
    %v608 = vld [vmem:[#allocation8 + $0x58] sm:$0xff]
    %v609 = vld [vmem:[#allocation8 + $0x60] sm:$0xff]
    %v610 = vld [vmem:[#allocation8 + $0x68] sm:$0xff]
    %v611 = vld [vmem:[#allocation8 + $0x70] sm:$0xff]
    %v612 = vld [vmem:[#allocation8 + $0x78] sm:$0xff]
    %v613 = vld [vmem:[#allocation10] sm:$0xff]
    %v614 = vld [vmem:[#allocation10 + $0x8] sm:$0xff]
    %v615 = vld [vmem:[#allocation10 + $0x10] sm:$0xff]
    %v616 = vld [vmem:[#allocation10 + $0x18] sm:$0xff]
    %v617 = vld [vmem:[#allocation10 + $0x20] sm:$0xff]
    %v618 = vld [vmem:[#allocation10 + $0x28] sm:$0xff]
    %v619 = vld [vmem:[#allocation10 + $0x30] sm:$0xff]
    %v620 = vld [vmem:[#allocation10 + $0x38] sm:$0xff]
    %v621 = vld [vmem:[#allocation10 + $0x40] sm:$0xff]
    %v622 = vld [vmem:[#allocation10 + $0x48] sm:$0xff]
    %v623 = vld [vmem:[#allocation10 + $0x50] sm:$0xff]
    %v624 = vld [vmem:[#allocation10 + $0x58] sm:$0xff]
    %v625 = vld [vmem:[#allocation10 + $0x60] sm:$0xff]
    %v626 = vld [vmem:[#allocation10 + $0x68] sm:$0xff]
    %v627 = vld [vmem:[#allocation10 + $0x70] sm:$0xff]
    %v628 = vld [vmem:[#allocation10 + $0x78] sm:$0xff]
    %629 = vmatprep.subr.mxu0 0.0
    %630 = vmatpush1.msra.mxu0 %v628
    %631 = vmatprep.subr.mxu0 0.0
    %632 = vmatpush1.msra.mxu0 %v627
    %633 = vmatprep.subr.mxu0 0.0
    %634 = vmatpush1.msra.mxu0 %v626
    %635 = vmatprep.subr.mxu0 0.0
    %636 = vmatpush1.msra.mxu0 %v625
    %637 = vmatprep.subr.mxu0 0.0
    %638 = vmatpush1.msra.mxu0 %v624
    %639 = vmatprep.subr.mxu0 0.0
    %640 = vmatpush1.msra.mxu0 %v623
    %641 = vmatprep.subr.mxu0 0.0
    %642 = vmatpush1.msra.mxu0 %v622
    %643 = vmatprep.subr.mxu0 0.0
    %644 = vmatpush1.msra.mxu0 %v621
    %645 = vmatprep.subr.mxu0 0.0
    %646 = vmatpush1.msra.mxu0 %v620
    %647 = vmatprep.subr.mxu0 0.0
    %648 = vmatpush1.msra.mxu0 %v619
    %649 = vmatprep.subr.mxu0 0.0
    %650 = vmatpush1.msra.mxu0 %v618
    %651 = vmatprep.subr.mxu0 0.0
    %652 = vmatpush1.msra.mxu0 %v617
    %653 = vmatprep.subr.mxu0 0.0
    %654 = vmatpush1.msra.mxu0 %v616
    %655 = vmatprep.subr.mxu0 0.0
    %656 = vmatpush1.msra.mxu0 %v615
    %657 = vmatprep.subr.mxu0 0.0
    %658 = vmatpush1.msra.mxu0 %v614
    %659 = vmatprep.subr.mxu0 0.0
    %660 = vmatpush1.msra.mxu0 %v613
    %661 = vmatprep.subr.mxu0 0.0
    %662 = vmatpush2.msra.mxu0 0.0
    %663 = vmatprep.subr.mxu0 0.0
    %664 = vmatpush2.msra.mxu0 0.0
    %665 = vmatprep.subr.mxu0 0.0
    %666 = vmatpush2.msra.mxu0 0.0
    %667 = vmatprep.subr.mxu0 0.0
    %668 = vmatpush2.msra.mxu0 0.0
    %669 = vmatprep.subr.mxu0 0.0
    %670 = vmatpush2.msra.mxu0 0.0
    %671 = vmatprep.subr.mxu0 0.0
    %672 = vmatpush2.msra.mxu0 0.0
    %673 = vmatprep.subr.mxu0 0.0
    %674 = vmatpush2.msra.mxu0 0.0
    %675 = vmatprep.subr.mxu0 0.0
    %676 = vmatpush2.msra.mxu0 0.0
    %677 = vmatprep.subr.mxu0 0.0
    %678 = vmatpush2.msra.mxu0 0.0
    %679 = vmatprep.subr.mxu0 0.0
    %680 = vmatpush2.msra.mxu0 0.0
    %681 = vmatprep.subr.mxu0 0.0
    %682 = vmatpush2.msra.mxu0 0.0
    %683 = vmatprep.subr.mxu0 0.0
    %684 = vmatpush2.msra.mxu0 0.0
    %685 = vmatprep.subr.mxu0 0.0
    %686 = vmatpush2.msra.mxu0 0.0
    %687 = vmatprep.subr.mxu0 0.0
    %688 = vmatpush2.msra.mxu0 0.0
    %689 = vmatprep.subr.mxu0 0.0
    %690 = vmatpush2.msra.mxu0 0.0
    %691 = vmatprep.subr.mxu0 0.0
    %692 = vmatpush2.msra.mxu0 0.0
    %693 = vmatprep.mubr.f32.mxu0 0.0
    %694 = vmatmul.mubr.f32.gmra.mxu0 %v594
    %v695 = vpop.f32.mrf.mxu0
    %v696 = vadd.f32 0.0, %v695
    %v697 = vpop.f32.mrf.mxu0
    %698 = vmatprep.mubr.f32.mxu0 0.0
    %699 = vmatmul.mubr.f32.gmra.mxu0 %v595
    %v700 = vpop.f32.mrf.mxu0
    %v701 = vadd.f32 0.0, %v700
    %v702 = vpop.f32.mrf.mxu0
    %703 = vmatprep.mubr.f32.mxu0 0.0
    %704 = vmatmul.mubr.f32.gmra.mxu0 %v596
    %v705 = vpop.f32.mrf.mxu0
    %v706 = vadd.f32 0.0, %v705
    %v707 = vpop.f32.mrf.mxu0
    %708 = vdwg.mxu0
    %709 = vmatprep.subr.mxu0 0.0
    %710 = vmatpush1.msra.mxu0 %v612
    %711 = vmatprep.subr.mxu0 0.0
    %712 = vmatpush1.msra.mxu0 %v611
    %713 = vmatprep.subr.mxu0 0.0
    %714 = vmatpush1.msra.mxu0 %v610
    %715 = vmatprep.subr.mxu0 0.0
    %716 = vmatpush1.msra.mxu0 %v609
    %717 = vmatprep.subr.mxu0 0.0
    %718 = vmatpush1.msra.mxu0 %v608
    %719 = vmatprep.subr.mxu0 0.0
    %720 = vmatpush1.msra.mxu0 %v607
    %721 = vmatprep.subr.mxu0 0.0
    %722 = vmatpush1.msra.mxu0 %v606
    %723 = vmatprep.subr.mxu0 0.0
    %724 = vmatpush1.msra.mxu0 %v605
    %725 = vmatprep.subr.mxu0 0.0
    %726 = vmatpush1.msra.mxu0 %v604
    %727 = vmatprep.subr.mxu0 0.0
    %728 = vmatpush1.msra.mxu0 %v603
    %729 = vmatprep.subr.mxu0 0.0
    %730 = vmatpush1.msra.mxu0 %v602
    %731 = vmatprep.subr.mxu0 0.0
    %732 = vmatpush1.msra.mxu0 %v601
    %733 = vmatprep.subr.mxu0 0.0
    %734 = vmatpush1.msra.mxu0 %v600
    %735 = vmatprep.subr.mxu0 0.0
    %736 = vmatpush1.msra.mxu0 %v599
    %737 = vmatprep.subr.mxu0 0.0
    %738 = vmatpush1.msra.mxu0 %v598
    %739 = vmatprep.subr.mxu0 0.0
    %740 = vmatpush1.msra.mxu0 %v597
    %741 = vmatprep.subr.mxu0 0.0
    %742 = vmatpush2.msra.mxu0 0.0
    %743 = vmatprep.subr.mxu0 0.0
    %744 = vmatpush2.msra.mxu0 0.0
    %745 = vmatprep.subr.mxu0 0.0
    %746 = vmatpush2.msra.mxu0 0.0
    %747 = vmatprep.subr.mxu0 0.0
    %748 = vmatpush2.msra.mxu0 0.0
    %749 = vmatprep.subr.mxu0 0.0
    %750 = vmatpush2.msra.mxu0 0.0
    %751 = vmatprep.subr.mxu0 0.0
    %752 = vmatpush2.msra.mxu0 0.0
    %753 = vmatprep.subr.mxu0 0.0
    %754 = vmatpush2.msra.mxu0 0.0
    %755 = vmatprep.subr.mxu0 0.0
    %756 = vmatpush2.msra.mxu0 0.0
    %757 = vmatprep.subr.mxu0 0.0
    %758 = vmatpush2.msra.mxu0 0.0
    %759 = vmatprep.subr.mxu0 0.0
    %760 = vmatpush2.msra.mxu0 0.0
    %761 = vmatprep.subr.mxu0 0.0
    %762 = vmatpush2.msra.mxu0 0.0
    %763 = vmatprep.subr.mxu0 0.0
    %764 = vmatpush2.msra.mxu0 0.0
    %765 = vmatprep.subr.mxu0 0.0
    %766 = vmatpush2.msra.mxu0 0.0
    %767 = vmatprep.subr.mxu0 0.0
    %768 = vmatpush2.msra.mxu0 0.0
    %769 = vmatprep.subr.mxu0 0.0
    %770 = vmatpush2.msra.mxu0 0.0
    %771 = vmatprep.subr.mxu0 0.0
    %772 = vmatpush2.msra.mxu0 0.0
    %773 = vmatprep.mubr.f32.mxu0 0.0
    %774 = vmatmul.mubr.f32.gmra.mxu0 %v562
    %v775 = vpop.f32.mrf.mxu0
    %v776 = vadd.f32 %v696, %v775
    %v777 = vpop.f32.mrf.mxu0
    %778 = vmatprep.mubr.f32.mxu0 0.0
    %779 = vmatmul.mubr.f32.gmra.mxu0 %v563
    %v780 = vpop.f32.mrf.mxu0
    %v781 = vadd.f32 %v701, %v780
    %v782 = vpop.f32.mrf.mxu0
    %783 = vmatprep.mubr.f32.mxu0 0.0
    %784 = vmatmul.mubr.f32.gmra.mxu0 %v564
    %v785 = vpop.f32.mrf.mxu0
    %v786 = vadd.f32 %v706, %v785
    %v787 = vpop.f32.mrf.mxu0
    %788 = vdwg.mxu0
    %v789 = vld [vmem:[%s14] sm:$0x1]
    %v791 = vlaneseq
    %v792 = vshrl.u32 %v791, 7
    %v793 = vsub.s32 0, %v792
    %v794 = vrot.slane %v789, %v793
    %v796 = vadd.f32 %v776, %v794
    %v797 = vadd.f32 %v781, %v794
    %v798 = vadd.f32 %v786, %v794
    %v799 = vmul.f32 %v796, 0.01
    %v800 = vmul.f32 %v797, 0.01
    %v801 = vmul.f32 %v798, 0.01
    %v802 = vmax.f32 %v796, %v799
    %v803 = vmax.f32 %v797, %v800
    %v804 = vmax.f32 %v798, %v801
    %v805 = vld [vmem:[#allocation11] sm:$0xff]
    %v806 = vld [vmem:[#allocation11 + $0x8] sm:$0xff]
    %v807 = vld [vmem:[#allocation11 + $0x10] sm:$0xff]
    %v808 = vld [vmem:[#allocation11 + $0x18] sm:$0xff]
    %v809 = vld [vmem:[#allocation11 + $0x20] sm:$0xff]
    %v810 = vld [vmem:[#allocation11 + $0x28] sm:$0xff]
    %v811 = vld [vmem:[#allocation11 + $0x30] sm:$0xff]
    %v812 = vld [vmem:[#allocation11 + $0x38] sm:$0xff]
    %v813 = vld [vmem:[#allocation11 + $0x40] sm:$0xff]
    %v814 = vld [vmem:[#allocation11 + $0x48] sm:$0xff]
    %v815 = vld [vmem:[#allocation11 + $0x50] sm:$0xff]
    %v816 = vld [vmem:[#allocation11 + $0x58] sm:$0xff]
    %v817 = vld [vmem:[#allocation11 + $0x60] sm:$0xff]
    %v818 = vld [vmem:[#allocation11 + $0x68] sm:$0xff]
    %v819 = vld [vmem:[#allocation11 + $0x70] sm:$0xff]
    %v820 = vld [vmem:[#allocation11 + $0x78] sm:$0xff]
    %v821 = vld [vmem:[%s16] sm:$0x1]
    %v823 = vlaneseq
    %v824 = vshrl.u32 %v823, 7
    %v825 = vsub.s32 0, %v824
    %v826 = vrot.slane %v821, %v825
    %828 = vmatprep.subr.mxu0 0.0
    %829 = vmatpush1.msra.mxu0 %v820
    %830 = vmatprep.subr.mxu0 0.0
    %831 = vmatpush1.msra.mxu0 %v819
    %832 = vmatprep.subr.mxu0 0.0
    %833 = vmatpush1.msra.mxu0 %v818
    %834 = vmatprep.subr.mxu0 0.0
    %835 = vmatpush1.msra.mxu0 %v817
    %836 = vmatprep.subr.mxu0 0.0
    %837 = vmatpush1.msra.mxu0 %v816
    %838 = vmatprep.subr.mxu0 0.0
    %839 = vmatpush1.msra.mxu0 %v815
    %840 = vmatprep.subr.mxu0 0.0
    %841 = vmatpush1.msra.mxu0 %v814
    %842 = vmatprep.subr.mxu0 0.0
    %843 = vmatpush1.msra.mxu0 %v813
    %844 = vmatprep.subr.mxu0 0.0
    %845 = vmatpush1.msra.mxu0 %v812
    %846 = vmatprep.subr.mxu0 0.0
    %847 = vmatpush1.msra.mxu0 %v811
    %848 = vmatprep.subr.mxu0 0.0
    %849 = vmatpush1.msra.mxu0 %v810
    %850 = vmatprep.subr.mxu0 0.0
    %851 = vmatpush1.msra.mxu0 %v809
    %852 = vmatprep.subr.mxu0 0.0
    %853 = vmatpush1.msra.mxu0 %v808
    %854 = vmatprep.subr.mxu0 0.0
    %855 = vmatpush1.msra.mxu0 %v807
    %856 = vmatprep.subr.mxu0 0.0
    %857 = vmatpush1.msra.mxu0 %v806
    %858 = vmatprep.subr.mxu0 0.0
    %859 = vmatpush1.msra.mxu0 %v805
    %860 = vmatprep.subr.mxu0 0.0
    %861 = vmatpush2.msra.mxu0 0.0
    %862 = vmatprep.subr.mxu0 0.0
    %863 = vmatpush2.msra.mxu0 0.0
    %864 = vmatprep.subr.mxu0 0.0
    %865 = vmatpush2.msra.mxu0 0.0
    %866 = vmatprep.subr.mxu0 0.0
    %867 = vmatpush2.msra.mxu0 0.0
    %868 = vmatprep.subr.mxu0 0.0
    %869 = vmatpush2.msra.mxu0 0.0
    %870 = vmatprep.subr.mxu0 0.0
    %871 = vmatpush2.msra.mxu0 0.0
    %872 = vmatprep.subr.mxu0 0.0
    %873 = vmatpush2.msra.mxu0 0.0
    %874 = vmatprep.subr.mxu0 0.0
    %875 = vmatpush2.msra.mxu0 0.0
    %876 = vmatprep.subr.mxu0 0.0
    %877 = vmatpush2.msra.mxu0 0.0
    %878 = vmatprep.subr.mxu0 0.0
    %879 = vmatpush2.msra.mxu0 0.0
    %880 = vmatprep.subr.mxu0 0.0
    %881 = vmatpush2.msra.mxu0 0.0
    %882 = vmatprep.subr.mxu0 0.0
    %883 = vmatpush2.msra.mxu0 0.0
    %884 = vmatprep.subr.mxu0 0.0
    %885 = vmatpush2.msra.mxu0 0.0
    %886 = vmatprep.subr.mxu0 0.0
    %887 = vmatpush2.msra.mxu0 0.0
    %888 = vmatprep.subr.mxu0 0.0
    %889 = vmatpush2.msra.mxu0 0.0
    %890 = vmatprep.subr.mxu0 0.0
    %891 = vmatpush2.msra.mxu0 0.0
    %892 = vmatprep.mubr.f32.mxu0 0.0
    %893 = vmatmul.mubr.f32.gmra.mxu0 %v802
    %v894 = vpop.f32.mrf.mxu0
    %v895 = vadd.f32 %v826, %v894
    %v896 = vpop.f32.mrf.mxu0
    %897 = vmatprep.mubr.f32.mxu0 0.0
    %898 = vmatmul.mubr.f32.gmra.mxu0 %v803
    %v899 = vpop.f32.mrf.mxu0
    %v900 = vadd.f32 %v826, %v899
    %v901 = vpop.f32.mrf.mxu0
    %902 = vmatprep.mubr.f32.mxu0 0.0
    %903 = vmatmul.mubr.f32.gmra.mxu0 %v804
    %v904 = vpop.f32.mrf.mxu0
    %v905 = vadd.f32 %v826, %v904
    %v906 = vpop.f32.mrf.mxu0
    %907 = vdwg.mxu0
    %v908 = vmul.f32 %v895, 0.01
    %v909 = vmul.f32 %v900, 0.01
    %v910 = vmul.f32 %v905, 0.01
    %v911 = vmax.f32 %v895, %v908
    %v912 = vmax.f32 %v900, %v909
    %v913 = vmax.f32 %v905, %v910
    %v914 = vld [vmem:[#allocation13] sm:$0xff]
    %v915 = vld [vmem:[#allocation13 + $0x8] sm:$0xff]
    %v916 = vld [vmem:[#allocation13 + $0x10] sm:$0xff]
    %v917 = vld [vmem:[#allocation13 + $0x18] sm:$0xff]
    %v918 = vld [vmem:[#allocation13 + $0x20] sm:$0xff]
    %v919 = vld [vmem:[#allocation13 + $0x28] sm:$0xff]
    %v920 = vld [vmem:[#allocation13 + $0x30] sm:$0xff]
    %v921 = vld [vmem:[#allocation13 + $0x38] sm:$0xff]
    %v922 = vld [vmem:[#allocation13 + $0x40] sm:$0xff]
    %v923 = vld [vmem:[#allocation13 + $0x48] sm:$0xff]
    %v924 = vld [vmem:[#allocation13 + $0x50] sm:$0xff]
    %v925 = vld [vmem:[#allocation13 + $0x58] sm:$0xff]
    %v926 = vld [vmem:[#allocation13 + $0x60] sm:$0xff]
    %v927 = vld [vmem:[#allocation13 + $0x68] sm:$0xff]
    %v928 = vld [vmem:[#allocation13 + $0x70] sm:$0xff]
    %v929 = vld [vmem:[#allocation13 + $0x78] sm:$0xff]
    %v930 = vld [vmem:[%s18] sm:$0x1]
    %v932 = vlaneseq
    %v933 = vshrl.u32 %v932, 7
    %v934 = vsub.s32 0, %v933
    %v935 = vrot.slane %v930, %v934
    %937 = vmatprep.subr.mxu0 0.0
    %938 = vmatpush1.msra.mxu0 %v929
    %939 = vmatprep.subr.mxu0 0.0
    %940 = vmatpush1.msra.mxu0 %v928
    %941 = vmatprep.subr.mxu0 0.0
    %942 = vmatpush1.msra.mxu0 %v927
    %943 = vmatprep.subr.mxu0 0.0
    %944 = vmatpush1.msra.mxu0 %v926
    %945 = vmatprep.subr.mxu0 0.0
    %946 = vmatpush1.msra.mxu0 %v925
    %947 = vmatprep.subr.mxu0 0.0
    %948 = vmatpush1.msra.mxu0 %v924
    %949 = vmatprep.subr.mxu0 0.0
    %950 = vmatpush1.msra.mxu0 %v923
    %951 = vmatprep.subr.mxu0 0.0
    %952 = vmatpush1.msra.mxu0 %v922
    %953 = vmatprep.subr.mxu0 0.0
    %954 = vmatpush1.msra.mxu0 %v921
    %955 = vmatprep.subr.mxu0 0.0
    %956 = vmatpush1.msra.mxu0 %v920
    %957 = vmatprep.subr.mxu0 0.0
    %958 = vmatpush1.msra.mxu0 %v919
    %959 = vmatprep.subr.mxu0 0.0
    %960 = vmatpush1.msra.mxu0 %v918
    %961 = vmatprep.subr.mxu0 0.0
    %962 = vmatpush1.msra.mxu0 %v917
    %963 = vmatprep.subr.mxu0 0.0
    %964 = vmatpush1.msra.mxu0 %v916
    %965 = vmatprep.subr.mxu0 0.0
    %966 = vmatpush1.msra.mxu0 %v915
    %967 = vmatprep.subr.mxu0 0.0
    %968 = vmatpush1.msra.mxu0 %v914
    %969 = vmatprep.subr.mxu0 0.0
    %970 = vmatpush2.msra.mxu0 0.0
    %971 = vmatprep.subr.mxu0 0.0
    %972 = vmatpush2.msra.mxu0 0.0
    %973 = vmatprep.subr.mxu0 0.0
    %974 = vmatpush2.msra.mxu0 0.0
    %975 = vmatprep.subr.mxu0 0.0
    %976 = vmatpush2.msra.mxu0 0.0
    %977 = vmatprep.subr.mxu0 0.0
    %978 = vmatpush2.msra.mxu0 0.0
    %979 = vmatprep.subr.mxu0 0.0
    %980 = vmatpush2.msra.mxu0 0.0
    %981 = vmatprep.subr.mxu0 0.0
    %982 = vmatpush2.msra.mxu0 0.0
    %983 = vmatprep.subr.mxu0 0.0
    %984 = vmatpush2.msra.mxu0 0.0
    %985 = vmatprep.subr.mxu0 0.0
    %986 = vmatpush2.msra.mxu0 0.0
    %987 = vmatprep.subr.mxu0 0.0
    %988 = vmatpush2.msra.mxu0 0.0
    %989 = vmatprep.subr.mxu0 0.0
    %990 = vmatpush2.msra.mxu0 0.0
    %991 = vmatprep.subr.mxu0 0.0
    %992 = vmatpush2.msra.mxu0 0.0
    %993 = vmatprep.subr.mxu0 0.0
    %994 = vmatpush2.msra.mxu0 0.0
    %995 = vmatprep.subr.mxu0 0.0
    %996 = vmatpush2.msra.mxu0 0.0
    %997 = vmatprep.subr.mxu0 0.0
    %998 = vmatpush2.msra.mxu0 0.0
    %999 = vmatprep.subr.mxu0 0.0
    %1000 = vmatpush2.msra.mxu0 0.0
    %1001 = vmatprep.mubr.f32.mxu0 0.0
    %1002 = vmatmul.mubr.f32.gmra.mxu0 %v911
    %v1003 = vpop.f32.mrf.mxu0
    %v1004 = vadd.f32 %v935, %v1003
    %v1005 = vpop.f32.mrf.mxu0
    %1006 = vmatprep.mubr.f32.mxu0 0.0
    %1007 = vmatmul.mubr.f32.gmra.mxu0 %v912
    %v1008 = vpop.f32.mrf.mxu0
    %v1009 = vadd.f32 %v935, %v1008
    %v1010 = vpop.f32.mrf.mxu0
    %1011 = vmatprep.mubr.f32.mxu0 0.0
    %1012 = vmatmul.mubr.f32.gmra.mxu0 %v913
    %v1013 = vpop.f32.mrf.mxu0
    %v1014 = vadd.f32 %v935, %v1013
    %v1015 = vpop.f32.mrf.mxu0
    %1016 = vdwg.mxu0
    %v1017 = vmul.f32 %v1004, 0.01
    %v1018 = vmul.f32 %v1009, 0.01
    %v1019 = vmul.f32 %v1014, 0.01
    %v1020 = vmax.f32 %v1004, %v1017
    %v1021 = vmax.f32 %v1009, %v1018
    %v1022 = vmax.f32 %v1014, %v1019
    %v1023 = vld [vmem:[#allocation14] sm:$0xff]
    %v1024 = vld [vmem:[#allocation14 + $0x8] sm:$0xff]
    %v1025 = vld [vmem:[#allocation14 + $0x10] sm:$0xff]
    %v1026 = vld [vmem:[#allocation14 + $0x18] sm:$0xff]
    %v1027 = vld [vmem:[#allocation14 + $0x20] sm:$0xff]
    %v1028 = vld [vmem:[#allocation14 + $0x28] sm:$0xff]
    %v1029 = vld [vmem:[#allocation14 + $0x30] sm:$0xff]
    %v1030 = vld [vmem:[#allocation14 + $0x38] sm:$0xff]
    %v1031 = vld [vmem:[#allocation14 + $0x40] sm:$0xff]
    %v1032 = vld [vmem:[#allocation14 + $0x48] sm:$0xff]
    %v1033 = vld [vmem:[#allocation14 + $0x50] sm:$0xff]
    %v1034 = vld [vmem:[#allocation14 + $0x58] sm:$0xff]
    %v1035 = vld [vmem:[#allocation14 + $0x60] sm:$0xff]
    %v1036 = vld [vmem:[#allocation14 + $0x68] sm:$0xff]
    %v1037 = vld [vmem:[#allocation14 + $0x70] sm:$0xff]
    %v1038 = vld [vmem:[#allocation14 + $0x78] sm:$0xff]
    %v1039 = vld [vmem:[%s20] sm:$0x1]
    %v1041 = vlaneseq
    %v1042 = vshrl.u32 %v1041, 7
    %v1043 = vsub.s32 0, %v1042
    %v1044 = vrot.slane %v1039, %v1043
    %1046 = vmatprep.subr.mxu0 0.0
    %1047 = vmatpush1.msra.mxu0 %v1038
    %1048 = vmatprep.subr.mxu0 0.0
    %1049 = vmatpush1.msra.mxu0 %v1037
    %1050 = vmatprep.subr.mxu0 0.0
    %1051 = vmatpush1.msra.mxu0 %v1036
    %1052 = vmatprep.subr.mxu0 0.0
    %1053 = vmatpush1.msra.mxu0 %v1035
    %1054 = vmatprep.subr.mxu0 0.0
    %1055 = vmatpush1.msra.mxu0 %v1034
    %1056 = vmatprep.subr.mxu0 0.0
    %1057 = vmatpush1.msra.mxu0 %v1033
    %1058 = vmatprep.subr.mxu0 0.0
    %1059 = vmatpush1.msra.mxu0 %v1032
    %1060 = vmatprep.subr.mxu0 0.0
    %1061 = vmatpush1.msra.mxu0 %v1031
    %1062 = vmatprep.subr.mxu0 0.0
    %1063 = vmatpush1.msra.mxu0 %v1030
    %1064 = vmatprep.subr.mxu0 0.0
    %1065 = vmatpush1.msra.mxu0 %v1029
    %1066 = vmatprep.subr.mxu0 0.0
    %1067 = vmatpush1.msra.mxu0 %v1028
    %1068 = vmatprep.subr.mxu0 0.0
    %1069 = vmatpush1.msra.mxu0 %v1027
    %1070 = vmatprep.subr.mxu0 0.0
    %1071 = vmatpush1.msra.mxu0 %v1026
    %1072 = vmatprep.subr.mxu0 0.0
    %1073 = vmatpush1.msra.mxu0 %v1025
    %1074 = vmatprep.subr.mxu0 0.0
    %1075 = vmatpush1.msra.mxu0 %v1024
    %1076 = vmatprep.subr.mxu0 0.0
    %1077 = vmatpush1.msra.mxu0 %v1023
    %1078 = vmatprep.subr.mxu0 0.0
    %1079 = vmatpush2.msra.mxu0 0.0
    %1080 = vmatprep.subr.mxu0 0.0
    %1081 = vmatpush2.msra.mxu0 0.0
    %1082 = vmatprep.subr.mxu0 0.0
    %1083 = vmatpush2.msra.mxu0 0.0
    %1084 = vmatprep.subr.mxu0 0.0
    %1085 = vmatpush2.msra.mxu0 0.0
    %1086 = vmatprep.subr.mxu0 0.0
    %1087 = vmatpush2.msra.mxu0 0.0
    %1088 = vmatprep.subr.mxu0 0.0
    %1089 = vmatpush2.msra.mxu0 0.0
    %1090 = vmatprep.subr.mxu0 0.0
    %1091 = vmatpush2.msra.mxu0 0.0
    %1092 = vmatprep.subr.mxu0 0.0
    %1093 = vmatpush2.msra.mxu0 0.0
    %1094 = vmatprep.subr.mxu0 0.0
    %1095 = vmatpush2.msra.mxu0 0.0
    %1096 = vmatprep.subr.mxu0 0.0
    %1097 = vmatpush2.msra.mxu0 0.0
    %1098 = vmatprep.subr.mxu0 0.0
    %1099 = vmatpush2.msra.mxu0 0.0
    %1100 = vmatprep.subr.mxu0 0.0
    %1101 = vmatpush2.msra.mxu0 0.0
    %1102 = vmatprep.subr.mxu0 0.0
    %1103 = vmatpush2.msra.mxu0 0.0
    %1104 = vmatprep.subr.mxu0 0.0
    %1105 = vmatpush2.msra.mxu0 0.0
    %1106 = vmatprep.subr.mxu0 0.0
    %1107 = vmatpush2.msra.mxu0 0.0
    %1108 = vmatprep.subr.mxu0 0.0
    %1109 = vmatpush2.msra.mxu0 0.0
    %1110 = vmatprep.mubr.f32.mxu0 0.0
    %1111 = vmatmul.mubr.f32.gmra.mxu0 %v1020
    %v1112 = vpop.f32.mrf.mxu0
    %v1113 = vadd.f32 %v1044, %v1112
    %v1114 = vpop.f32.mrf.mxu0
    %1115 = vmatprep.mubr.f32.mxu0 0.0
    %1116 = vmatmul.mubr.f32.gmra.mxu0 %v1021
    %v1117 = vpop.f32.mrf.mxu0
    %v1118 = vadd.f32 %v1044, %v1117
    %v1119 = vpop.f32.mrf.mxu0
    %1120 = vmatprep.mubr.f32.mxu0 0.0
    %1121 = vmatmul.mubr.f32.gmra.mxu0 %v1022
    %v1122 = vpop.f32.mrf.mxu0
    %v1123 = vadd.f32 %v1044, %v1122
    %v1124 = vpop.f32.mrf.mxu0
    %1125 = vdwg.mxu0
    %v1126 = vmul.f32 %v1113, 0.01
    %v1127 = vmul.f32 %v1118, 0.01
    %v1128 = vmul.f32 %v1123, 0.01
    %v1129 = vmax.f32 %v1113, %v1126
    %v1130 = vmax.f32 %v1118, %v1127
    %v1131 = vmax.f32 %v1123, %v1128
    %1132 = vst [vmem:[#allocation16] sm:$0xff] %v1129
    %1133 = vst [vmem:[#allocation16 + $0x8] sm:$0xff] %v1130
    %1134 = vst [vmem:[#allocation16 + $0x10] sm:$0xff] %v1131
    // Predicated region
    $region118: #{tpu_custom_call.1} parent=1 // pred_check
      _
    $region119: #{tpu_custom_call.1} parent=1 // pred_check_branch
      %1136 = sbr.rel (0) target = $region121
    $region120: #{tpu_custom_call.1} parent=1 // pred_region
      %s1138 = ssub.s32 384, 384
      %1139 = vsyncadd [#allocation4], %s1138
      %s1140 = sshll.u32 [#allocation16], 4
      %s1141 = int_to_ptr.vmem [resolvable:$true] %s1140
      %1146 = dma.vmem_to_hbm [thread:$0]  %s1141, 384, %s21, [#allocation4], 128, 128, 8
    $region121: #{tpu_custom_call.1} parent=1 // pred_fallthru
      _
    // Predicated region
    $region122: #{tpu_custom_call.1} parent=1 // pred_check
      _
    $region123: #{tpu_custom_call.1} parent=1 // pred_check_branch
      %1148 = sbr.rel (0) target = $region125
    $region124: #{tpu_custom_call.1} parent=1 // pred_region
      %1149 = dma.done [#allocation4], 384
    $region125: #{tpu_custom_call.1} parent=1 // pred_fallthru
      _
    %1150 = vsyncpa [#allocation3], 1
    %1151 = vsyncpa [#allocation6], 1
    %1152 = vsyncpa [#allocation9], 1
    %1153 = vsyncpa [#allocation12], 1
    %1154 = vsyncpa [#allocation15], 1
    %1155 = vsyncpa [#allocation4], 1

</llo_original>
